<compile_context>
chip_gen: v7x
topology: tpu7x:2x2x1
jax: 0.10.0
libtpu: 0.0.40
codegen_flags: <defaults>
</compile_context>

<pallas_src>
import functools

import jax
import jax.numpy as jnp
from jax.experimental import pallas as pl
from jax.experimental.pallas import tpu as pltpu


def _round_up(x, m):
    return (x + m - 1) // m * m


def _vq_kernel(x_ref, cb_ref, c2_ref, q_ref, partial_ref, *, n_valid):
    """One latent row tile: nearest-codebook lookup + partial squared error."""
    i = pl.program_id(0)

    x = x_ref[...]                        # (tn, Dp)  native dtype
    cb = cb_ref[...]                      # (Kp, Dp)  native dtype (resident)
    tn, dp = x.shape
    kp = cb.shape[0]

    # score[n,k] = ||c_k||^2 - 2 <x_n, c_k>  (same argmin as the full distance)
    xc = jax.lax.dot_general(
        x, cb, (((1,), (1,)), ((), ())),
        preferred_element_type=jnp.float32)              # (tn, Kp) f32, MXU
    score = c2_ref[...] - 2.0 * xc                        # (1,Kp) + (tn,Kp)

    # First-index argmin via min-reductions only (robust Mosaic lowering):
    #   row_min -> lanes equal to it -> smallest such lane index -> 0/1 one-hot.
    row_min = jnp.min(score, axis=1, keepdims=True)                  # (tn, 1)
    iota = jax.lax.broadcasted_iota(jnp.int32, (tn, kp), 1)          # (tn, Kp)
    cand = jnp.where(score == row_min, iota, kp)                     # (tn, Kp)
    inds = jnp.min(cand, axis=1, keepdims=True)                      # (tn, 1)
    one_hot = (iota == inds).astype(cb.dtype)                        # exact 0/1

    q = jnp.dot(one_hot, cb, preferred_element_type=jnp.float32)     # (tn, Dp) f32
    q_ref[...] = q.astype(q_ref.dtype)

    # Partial sum of squared error for the VQ loss.  Padded D columns are zero
    # in both x and q, so they contribute nothing; padded N rows are masked out.
    diff = q - x.astype(jnp.float32)
    if n_valid is not None:
        row = jax.lax.broadcasted_iota(jnp.int32, (tn, 1), 0) + i * tn
        diff = jnp.where(row < n_valid, diff, 0.0)
    psum = jnp.sum(diff * diff, axis=0, keepdims=True)    # (1, Dp): sublane reduce only
    partial_ref[...] = psum.reshape(1, 1, dp)             # lane reduce deferred to wrapper


def vector_quantize(latents, codebook, beta=0.25, tile_n=256):
    """Returns (quantized_latents, vq_loss), matching the PyTorch forward values."""
    N, D = latents.shape
    K, D2 = codebook.shape
    assert D == D2

    out_dtype = latents.dtype
    itemsize = jnp.dtype(out_dtype).itemsize
    sub = max(8, 32 // itemsize)          # sublane multiple: f32->8, bf16->16, int8->32

    # Row tile: large enough to feed the MXU, multiple of the sublane packing.
    tile_n = min(int(tile_n), _round_up(N, sub))
    tile_n = max(sub, tile_n // sub * sub)
    Np = _round_up(N, tile_n)
    G = Np // tile_n

    # Lane padding: K always to 128 (unmasked score/argmin/one-hot work);
    # D only when >= 64 (below that the extra HBM traffic loses).
    Kp = _round_up(K, 128)
    Dp = _round_up(D, 128) if D >= 64 else D

    lat_p = latents
    if (Np, Dp) != (N, D):
        lat_p = jnp.zeros((Np, Dp), out_dtype).at[:N, :D].set(latents)
    cb_p = codebook
    if (Kp, Dp) != (K, D):
        cb_p = jnp.zeros((Kp, Dp), codebook.dtype).at[:K, :D].set(codebook)

    # Codebook row norms, hoisted out of the grid loop.  Padded rows get a huge
    # norm so they can never win the argmin.
    c2 = jnp.sum(cb_p.astype(jnp.float32) ** 2, axis=1)
    if Kp != K:
        c2 = c2.at[K:].set(jnp.float32(1e30))
    c2 = c2.reshape(1, Kp)

    kernel = functools.partial(_vq_kernel, n_valid=(N if Np != N else None))

    q_p, partials = pl.pallas_call(
        kernel,
        out_shape=(
            jax.ShapeDtypeStruct((Np, Dp), out_dtype),
            jax.ShapeDtypeStruct((G, 1, Dp), jnp.float32),
        ),
        grid_spec=pltpu.PrefetchScalarGridSpec(
            num_scalar_prefetch=0,
            grid=(G,),
            in_specs=[
                pl.BlockSpec((tile_n, Dp), lambda i: (i, 0)),    # latent row tile
                pl.BlockSpec((Kp, Dp), lambda i: (0, 0)),        # resident codebook
                pl.BlockSpec((1, Kp), lambda i: (0, 0)),         # resident row norms
            ],
            out_specs=(
                pl.BlockSpec((tile_n, Dp), lambda i: (i, 0)),    # quantized tile
                pl.BlockSpec((1, 1, Dp), lambda i: (i, 0, 0)),   # per-tile sq-error
            ),
        ),
        compiler_params=pltpu.CompilerParams(
            dimension_semantics=("parallel",),   # no cross-step carry -> megacore-safe
            vmem_limit_bytes=32 * 1024 * 1024,
        ),
    )(lat_p, cb_p, c2)

    q = q_p[:N, :D]
    mse = jnp.sum(partials) / jnp.float32(N * D)
    vq_loss = (1.0 + beta) * mse
    return q, vq_loss


if __name__ == "__main__":
    key = jax.random.PRNGKey(0)
    k_lat, k_cb = jax.random.split(key)

    # Shapes consistent with the module: K=32 codes, D=16 embedding dim,
    # N=500 flattened latent vectors (exercises row padding + multiple tiles).
    N, D, K = 500, 16, 32
    beta = 0.25
    latents = jax.random.normal(k_lat, (N, D), dtype=jnp.float32)
    codebook = jax.random.normal(k_cb, (K, D), dtype=jnp.float32)  # weight.data.normal_()

    quantized, vq_loss = vector_quantize(latents, codebook, beta=beta)
    jax.block_until_ready((quantized, vq_loss))

    # Pure-JAX reference of the PyTorch forward.
    dist = (jnp.sum(latents ** 2, axis=1, keepdims=True)
            + jnp.sum(codebook ** 2, axis=1)
            - 2.0 * latents @ codebook.T)
    inds = jnp.argmin(dist, axis=1)
    q_ref = codebook[inds]
    mse = jnp.mean((q_ref - latents) ** 2)
    loss_ref = beta * mse + mse

    assert quantized.shape == (N, D)
    assert jnp.allclose(quantized, q_ref, atol=1e-5, rtol=1e-5)
    assert jnp.allclose(vq_loss, loss_ref, atol=1e-5, rtol=1e-5)
    print("KERNEL_OK")
</pallas_src>

<mosaic_0001>
module attributes {stable_mosaic.version = 11 : i64} {
  func.func @_vq_kernel(%arg0: i32, %arg1: memref<256x16xf32, #tpu.memory_space<vmem>>, %arg2: memref<128x16xf32, #tpu.memory_space<vmem>>, %arg3: memref<1x128xf32, #tpu.memory_space<vmem>>, %arg4: memref<256x16xf32, #tpu.memory_space<vmem>>, %arg5: memref<1x1x16xf32, #tpu.memory_space<vmem>>) attributes {dimension_semantics = [#tpu.dimension_semantics<parallel>], iteration_bounds = array<i64: 2>, scalar_prefetch = 0 : i64, scratch_operands = 0 : i64, tpu.core_type = #tpu.core_type<tc>, window_params = [{transform_indices = @transform_0, window_bounds = array<i64: 256, 16>}, {pipeline_mode = #tpu.pipeline_mode<synchronous>, transform_indices = @transform_1, window_bounds = array<i64: 128, 16>}, {pipeline_mode = #tpu.pipeline_mode<synchronous>, transform_indices = @transform_2, window_bounds = array<i64: 1, 128>}, {transform_indices = @transform_3, window_bounds = array<i64: 256, 16>}, {transform_indices = @transform_4, window_bounds = array<i64: 1, 1, 16>}]} {
    %c0 = arith.constant 0 : index
    %c0_0 = arith.constant 0 : index
    %0 = vector.load %arg1[%c0, %c0_0] : memref<256x16xf32, #tpu.memory_space<vmem>>, vector<256x16xf32>
    %c0_1 = arith.constant 0 : index
    %c0_2 = arith.constant 0 : index
    %1 = vector.load %arg2[%c0_1, %c0_2] : memref<128x16xf32, #tpu.memory_space<vmem>>, vector<128x16xf32>
    %cst = arith.constant dense<0.000000e+00> : vector<256x128xf32>
    %2 = tpu.matmul %0, %1, %cst {dimension_numbers = #tpu.dot_dimension_numbers<[1], [1], [0], [0], [0, 0, 1, 0], [], []>} : vector<256x16xf32>, vector<128x16xf32>, vector<256x128xf32> -> vector<256x128xf32>
    %c0_3 = arith.constant 0 : index
    %c0_4 = arith.constant 0 : index
    %3 = vector.load %arg3[%c0_3, %c0_4] : memref<1x128xf32, #tpu.memory_space<vmem>>, vector<1x128xf32>
    %cst_5 = arith.constant 2.000000e+00 : f32
    %4 = vector.broadcast %cst_5 : f32 to vector<256x128xf32>
    %5 = arith.mulf %4, %2 : vector<256x128xf32>
    %6 = vector.broadcast %3 : vector<1x128xf32> to vector<256x128xf32>
    %7 = arith.subf %6, %5 : vector<256x128xf32>
    %cst_6 = arith.constant dense<0x7F800000> : vector<256xf32>
    %8 = vector.multi_reduction <minimumf>, %7, %cst_6 [1] : vector<256x128xf32> to vector<256xf32>
    %9 = vector.shape_cast %8 : vector<256xf32> to vector<256x1xf32>
    %10 = tpu.iota {dimensions = array<i32: 1>} : vector<256x128xi32>
    %11 = vector.broadcast %9 : vector<256x1xf32> to vector<256x128xf32>
    %12 = arith.cmpf oeq, %7, %11 : vector<256x128xf32>
    %c128_i32 = arith.constant 128 : i32
    %13 = vector.broadcast %c128_i32 : i32 to vector<256x128xi32>
    %14 = arith.select %12, %10, %13 : vector<256x128xi1>, vector<256x128xi32>
    %cst_7 = arith.constant dense<2147483647> : vector<256xi32>
    %15 = vector.multi_reduction <minsi>, %14, %cst_7 [1] : vector<256x128xi32> to vector<256xi32>
    %16 = vector.shape_cast %15 : vector<256xi32> to vector<256x1xi32>
    %17 = vector.broadcast %16 : vector<256x1xi32> to vector<256x128xi32>
    %18 = arith.cmpi eq, %10, %17 : vector<256x128xi32>
    %19 = arith.extui %18 : vector<256x128xi1> to vector<256x128xi32>
    %20 = arith.sitofp %19 : vector<256x128xi32> to vector<256x128xf32>
    %cst_8 = arith.constant dense<0.000000e+00> : vector<256x16xf32>
    %21 = tpu.matmul %20, %1, %cst_8 {dimension_numbers = #tpu.dot_dimension_numbers<[1], [0], [0], [1], [0, 0, 1, 1], [], []>} : vector<256x128xf32>, vector<128x16xf32>, vector<256x16xf32> -> vector<256x16xf32>
    %c0_9 = arith.constant 0 : index
    %c0_10 = arith.constant 0 : index
    %22 = vector.load %arg4[%c0_9, %c0_10] : memref<256x16xf32, #tpu.memory_space<vmem>>, vector<256x16xf32>
    tpu.vector_store %arg4[%c0_9, %c0_10], %21 {strides = array<i32>} : memref<256x16xf32, #tpu.memory_space<vmem>>, vector<256x16xf32>,
    %23 = arith.subf %21, %0 : vector<256x16xf32>
    %24 = tpu.iota {dimensions = array<i32: 0>} : vector<256x1xi32>
    %c256_i32 = arith.constant 256 : i32
    %25 = arith.muli %arg0, %c256_i32 : i32
    %26 = vector.broadcast %25 : i32 to vector<256x1xi32>
    %27 = arith.addi %24, %26 : vector<256x1xi32>
    %c500_i32 = arith.constant 500 : i32
    %28 = vector.broadcast %c500_i32 : i32 to vector<256x1xi32>
    %29 = arith.cmpi slt, %27, %28 : vector<256x1xi32>
    %cst_11 = arith.constant 0.000000e+00 : f32
    %30 = vector.shape_cast %29 : vector<256x1xi1> to vector<256x1xi1>
    %31 = vector.broadcast %30 : vector<256x1xi1> to vector<256x16xi1>
    %32 = vector.broadcast %cst_11 : f32 to vector<256x16xf32>
    %33 = arith.select %31, %23, %32 : vector<256x16xi1>, vector<256x16xf32>
    %34 = arith.mulf %33, %33 : vector<256x16xf32>
    %cst_12 = arith.constant dense<0.000000e+00> : vector<16xf32>
    %35 = vector.multi_reduction <add>, %34, %cst_12 [0] : vector<256x16xf32> to vector<16xf32>
    %36 = vector.shape_cast %35 : vector<16xf32> to vector<1x16xf32>
    %37 = vector.shape_cast %36 : vector<1x16xf32> to vector<1x1x16xf32>
    %c0_13 = arith.constant 0 : index
    %c0_14 = arith.constant 0 : index
    %c0_15 = arith.constant 0 : index
    %38 = vector.load %arg5[%c0_13, %c0_14, %c0_15] : memref<1x1x16xf32, #tpu.memory_space<vmem>>, vector<1x1x16xf32>
    tpu.vector_store %arg5[%c0_13, %c0_14, %c0_15], %37 {strides = array<i32>} : memref<1x1x16xf32, #tpu.memory_space<vmem>>, vector<1x1x16xf32>,
    return
  }
  func.func @transform_0(%arg0: i32) -> (i32, i32) {
    %c0_i32 = arith.constant 0 : i32
    %c0_i32_0 = arith.constant 0 : i32
    return %arg0, %c0_i32 : i32, i32
  }
  func.func @transform_1(%arg0: i32) -> (i32, i32) {
    %c0_i32 = arith.constant 0 : i32
    %c0_i32_0 = arith.constant 0 : i32
    %c0_i32_1 = arith.constant 0 : i32
    return %c0_i32, %c0_i32_0 : i32, i32
  }
  func.func @transform_2(%arg0: i32) -> (i32, i32) {
    %c0_i32 = arith.constant 0 : i32
    %c0_i32_0 = arith.constant 0 : i32
    %c0_i32_1 = arith.constant 0 : i32
    return %c0_i32, %c0_i32_0 : i32, i32
  }
  func.func @transform_3(%arg0: i32) -> (i32, i32) {
    %c0_i32 = arith.constant 0 : i32
    %c0_i32_0 = arith.constant 0 : i32
    return %arg0, %c0_i32 : i32, i32
  }
  func.func @transform_4(%arg0: i32) -> (i32, i32, i32) {
    %c0_i32 = arith.constant 0 : i32
    %c0_i32_0 = arith.constant 0 : i32
    %c0_i32_1 = arith.constant 0 : i32
    return %arg0, %c0_i32, %c0_i32_0 : i32, i32, i32
  }
}

</mosaic_0001>

<llo_original>
// kernel: tpu_custom_call.1
$region0: #{tpu_custom_call.1}
  #allocation0 [shape = 'u32[]', space=smem, size = 0x4, offset = 0x4, fixed_abs, tag = 'smem constant byte address 0x4 - core index']
  #allocation1 [shape = 'u32[144,128]{1,0:T(1,128)}', space=vmem, size = 0x12000, scoped, tag = 'internal scratch']
  %s0 = inlined_call_operand.vmem [shape: f32[512,16], index: 0, kind: input, shape index: {}]
  %s1 = inlined_call_operand.vmem [shape: f32[128,16], index: 1, kind: input, shape index: {}]
  %s2 = inlined_call_operand.vmem [shape: f32[1,128], index: 2, kind: input, shape index: {}]
  %s3 = inlined_call_operand.vmem [shape: f32[512,16], index: 3, kind: output, shape index: {0}]
  %s4 = inlined_call_operand.hbm [shape: f32[2,1,16], index: 4, kind: output, shape index: {1}]
  %5 = xla_tuple %s3, %s4
  %s6 = sld [smem:[#allocation0]]
  $region53: #{tpu_custom_call.1} parent=0
    _
  %s8 = ssub.s32 1, %s6
  %s9 = scalar_select 0, %s8, %s6
  $region1: #{tpu_custom_call.1} parent=0
    #allocation2 [shape = 'u8[1024]{0}', space=vmem, size = 0x400, scoped, tag = 'output window, operand 1']
    #allocation3 [shape = 's32[2]{0}', space=sflag, size = 0x8, scoped, tag = 'scoped memory for tpu_custom_call.1']
    %10 = vsyncpa [#allocation3], 0
    %s11 = scalar_lea.sflag [#allocation3], 1
    %12 = vsyncpa %s11, 0
    loop: start=0, step=1, limit=4
    $region2: #{tpu_custom_call.1} parent=1 // loop_pre_header
      _
    $region3: #{tpu_custom_call.1} parent=1 // loop_header
      %s14 = sphi 0, %s18
      %p15 = scmp.ge.s32.totalorder %s14, 4
      %s24 = sphi 0, %s26
      %s27 = sphi 0, %s24
      %s28 = sphi 0, %s27
      %s44 = sphi 0, %s28
      %s48 = sphi 0, %s48
      %s50 = sphi 0, %s48
      %s51 = sphi 0, %s50
      %s65 = sphi 0, %s51
      %s69 = sphi 0, %s69
      %s71 = sphi 0, %s69
      %s72 = sphi 0, %s71
      %s86 = sphi 0, %s72
      %s92 = sphi 0, %s94
      %s95 = sphi 0, %s92
      %s96 = sphi 0, %s95
      %s112 = sphi 0, %s96
      %s118 = sphi 0, %s120
      %s121 = sphi 0, %s118
      %s122 = sphi 0, %s121
      %s138 = sphi 0, %s122
    $region4: #{tpu_custom_call.1} parent=1 // loop_header_branch
      %17 = sbr.rel (%p15) target = $region8
    $region5: #{tpu_custom_call.1} parent=1 // loop_body
      %s19 = ssub.s32 %s14, 1
      %s20 = ssub.s32 %s14, 2
      %s21 = sadd.s32 %s14, 1
      %s22 = ssub.s32 %s14, %s21
      %p23 = scmp.eq.s32.totalorder %s22, 0
      %s25 = sadd.s32 %s24, 1
      %s26 = scalar_select %p23, %s24, %s25
      %p29 = pneg %p23
      %p30 = scmp.eq.s32.totalorder %s14, 1
      %p31 = por %p29, %p30
      %p32 = scmp.ne.s32.totalorder %s24, %s27
      %p33 = scmp.eq.s32.totalorder %s14, 0
      %p34 = por %p32, %p33
      %p35 = scmp.ne.s32.totalorder %s24, %s27
      %p36 = scmp.eq.s32.totalorder %s19, 1
      %p37 = por %p35, %p36
      %p38 = scmp.ne.s32.totalorder %s27, %s28
      %p39 = scmp.eq.s32.totalorder %s19, 0
      %p40 = por %p38, %p39
      %p41 = scmp.ne.s32.totalorder %s27, %s28
      %p42 = scmp.eq.s32.totalorder %s20, 1
      %p43 = por %p41, %p42
      %p45 = scmp.ne.s32.totalorder %s28, %s44
      %p46 = scmp.eq.s32.totalorder %s20, 0
      %p47 = por %p45, %p46
      %s49 = sadd.s32 %s48, 1
      %p52 = scmp.eq.s32.totalorder %s14, 1
      %p53 = scmp.ne.s32.totalorder %s48, %s50
      %p54 = scmp.eq.s32.totalorder %s14, 0
      %p55 = por %p53, %p54
      %p56 = scmp.ne.s32.totalorder %s48, %s50
      %p57 = scmp.eq.s32.totalorder %s19, 1
      %p58 = por %p56, %p57
      %p59 = scmp.ne.s32.totalorder %s50, %s51
      %p60 = scmp.eq.s32.totalorder %s19, 0
      %p61 = por %p59, %p60
      %p62 = scmp.ne.s32.totalorder %s50, %s51
      %p63 = scmp.eq.s32.totalorder %s20, 1
      %p64 = por %p62, %p63
      %p66 = scmp.ne.s32.totalorder %s51, %s65
      %p67 = scmp.eq.s32.totalorder %s20, 0
      %p68 = por %p66, %p67
      %s70 = sadd.s32 %s69, 1
      %p73 = scmp.eq.s32.totalorder %s14, 1
      %p74 = scmp.ne.s32.totalorder %s69, %s71
      %p75 = scmp.eq.s32.totalorder %s14, 0
      %p76 = por %p74, %p75
      %p77 = scmp.ne.s32.totalorder %s69, %s71
      %p78 = scmp.eq.s32.totalorder %s19, 1
      %p79 = por %p77, %p78
      %p80 = scmp.ne.s32.totalorder %s71, %s72
      %p81 = scmp.eq.s32.totalorder %s19, 0
      %p82 = por %p80, %p81
      %p83 = scmp.ne.s32.totalorder %s71, %s72
      %p84 = scmp.eq.s32.totalorder %s20, 1
      %p85 = por %p83, %p84
      %p87 = scmp.ne.s32.totalorder %s72, %s86
      %p88 = scmp.eq.s32.totalorder %s20, 0
      %p89 = por %p87, %p88
      %s90 = ssub.s32 %s14, %s21
      %p91 = scmp.eq.s32.totalorder %s90, 0
      %s93 = sadd.s32 %s92, 1
      %s94 = scalar_select %p91, %s92, %s93
      %p97 = pneg %p91
      %p98 = scmp.eq.s32.totalorder %s14, 1
      %p99 = por %p97, %p98
      %p100 = scmp.ne.s32.totalorder %s92, %s95
      %p101 = scmp.eq.s32.totalorder %s14, 0
      %p102 = por %p100, %p101
      %p103 = scmp.ne.s32.totalorder %s92, %s95
      %p104 = scmp.eq.s32.totalorder %s19, 1
      %p105 = por %p103, %p104
      %p106 = scmp.ne.s32.totalorder %s95, %s96
      %p107 = scmp.eq.s32.totalorder %s19, 0
      %p108 = por %p106, %p107
      %p109 = scmp.ne.s32.totalorder %s95, %s96
      %p110 = scmp.eq.s32.totalorder %s20, 1
      %p111 = por %p109, %p110
      %p113 = scmp.ne.s32.totalorder %s96, %s112
      %p114 = scmp.eq.s32.totalorder %s20, 0
      %p115 = por %p113, %p114
      %s116 = ssub.s32 %s14, %s21
      %p117 = scmp.eq.s32.totalorder %s116, 0
      %s119 = sadd.s32 %s118, 1
      %s120 = scalar_select %p117, %s118, %s119
      %p123 = pneg %p117
      %p124 = scmp.eq.s32.totalorder %s14, 1
      %p125 = por %p123, %p124
      %p126 = scmp.ne.s32.totalorder %s118, %s121
      %p127 = scmp.eq.s32.totalorder %s14, 0
      %p128 = por %p126, %p127
      %p129 = scmp.ne.s32.totalorder %s118, %s121
      %p130 = scmp.eq.s32.totalorder %s19, 1
      %p131 = por %p129, %p130
      %p132 = scmp.ne.s32.totalorder %s121, %s122
      %p133 = scmp.eq.s32.totalorder %s19, 0
      %p134 = por %p132, %p133
      %p135 = scmp.ne.s32.totalorder %s121, %s122
      %p136 = scmp.eq.s32.totalorder %s20, 1
      %p137 = por %p135, %p136
      %p139 = scmp.ne.s32.totalorder %s122, %s138
      %p140 = scmp.eq.s32.totalorder %s20, 0
      %p141 = por %p139, %p140
      %p142 = scmp.le.s32.totalorder 1, %s14
      %p143 = scmp.lt.s32.totalorder %s14, 3
      %p144 = pnand %p142, %p143
      %p145 = pneg %p144
      // Predicated region
      $region9: #{tpu_custom_call.1} parent=5 // pred_check
        _
      $region10: #{tpu_custom_call.1} parent=5 // pred_check_branch
        %147 = sbr.rel (%p144) target = $region12
      $region11: #{tpu_custom_call.1} parent=5 // pred_region
        %s148 = ssub.s32 %s14, 1
        // Predicated region
        $region13: #{tpu_custom_call.1} parent=11 // pred_check
          %p149 = pneg %p61
        $region14: #{tpu_custom_call.1} parent=11 // pred_check_branch
          %151 = sbr.rel (%p149) target = $region16
        $region15: #{tpu_custom_call.1} parent=11 // pred_region
          _
        $region16: #{tpu_custom_call.1} parent=11 // pred_fallthru
          _
        // Predicated region
        $region17: #{tpu_custom_call.1} parent=11 // pred_check
          %p152 = pneg %p82
        $region18: #{tpu_custom_call.1} parent=11 // pred_check_branch
          %154 = sbr.rel (%p152) target = $region20
        $region19: #{tpu_custom_call.1} parent=11 // pred_region
          _
        $region20: #{tpu_custom_call.1} parent=11 // pred_fallthru
          _
      $region12: #{tpu_custom_call.1} parent=5 // pred_fallthru
        _
      %p155 = scmp.lt.s32.totalorder %s14, 2
      // Predicated region
      $region21: #{tpu_custom_call.1} parent=5 // pred_check
        %p156 = pneg %p155
      $region22: #{tpu_custom_call.1} parent=5 // pred_check_branch
        %158 = sbr.rel (%p156) target = $region24
      $region23: #{tpu_custom_call.1} parent=5 // pred_region
        // Predicated region
        $region25: #{tpu_custom_call.1} parent=23 // pred_check
          %p159 = pneg %p34
        $region26: #{tpu_custom_call.1} parent=23 // pred_check_branch
          %161 = sbr.rel (%p159) target = $region28
        $region27: #{tpu_custom_call.1} parent=23 // pred_region
          %s162 = smul.u32 32, %s14
          %p163 = scmp.lt.s32.totalorder %s162, 63
          %s164 = scalar_select %p163, %s162, 63
          %s165 = smul.addr %s164, 8
          %s166 = scalar_lea.vmem %s0, %s165
          %s167 = smul.u32 32, %s14
        $region28: #{tpu_custom_call.1} parent=23 // pred_fallthru
          _
      $region24: #{tpu_custom_call.1} parent=5 // pred_fallthru
        _
      %p168 = scmp.le.s32.totalorder 1, %s14
      %p169 = scmp.lt.s32.totalorder %s14, 3
      %p170 = pnand %p168, %p169
      %p171 = pneg %p170
      // Predicated region
      $region29: #{tpu_custom_call.1} parent=5 // pred_check
        _
      $region30: #{tpu_custom_call.1} parent=5 // pred_check_branch
        %173 = sbr.rel (%p170) target = $region32
      $region31: #{tpu_custom_call.1} parent=5 // pred_region
        %s174 = ssub.s32 %s14, 1
        %s175 = smul.u32 32, %s19
        %p176 = scmp.lt.s32.totalorder %s175, 63
        %s177 = scalar_select %p176, %s175, 63
        %s178 = smul.addr %s177, 8
        %s179 = scalar_lea.vmem %s0, %s178
        %p180 = pneg %p40
        %p181 = pneg %p37
        %p182 = pneg %p61
        %p183 = pneg %p58
        %p184 = pneg %p82
        %p185 = pneg %p79
        %p186 = pneg %p108
        %p187 = pneg %p105
        %s188 = smul.u32 32, %s19
        %p189 = scmp.lt.s32.totalorder %s188, 63
        %s190 = scalar_select %p189, %s188, 63
        %s191 = smul.addr %s190, 8
        %s192 = scalar_lea.vmem %s3, %s191
        %p193 = pneg %p134
        %p194 = pneg %p131
        %s195 = sand.u32 %s121, 1
        %s196 = scalar_lea.sflag [#allocation3], %s195
        %s197 = sand.u32 %s121, 1
        %s198 = scalar_lea.vmem [#allocation2], %s197
        %s199 = smul.u32 32, %s19
        %p200 = scmp.lt.s32.totalorder %s199, 63
        %s201 = scalar_select %p200, %s199, 63
        %s202 = smul.addr %s201, 8
        %s203 = scalar_lea.vmem %s0, %s202
        %s204 = smul.u32 32, %s19
        %s205 = smul.u32 32, %s19
        %p206 = scmp.lt.s32.totalorder %s205, 63
        %s207 = scalar_select %p206, %s205, 63
        %s208 = smul.addr %s207, 8
        %s209 = scalar_lea.vmem %s3, %s208
        %s210 = smul.u32 32, %s19
        %v211 = vld [vmem:[%s203] sm:$0xff]
        %v212 = vld [vmem:[%s203 + $0x8] sm:$0xff]
        %v213 = vld [vmem:[%s203 + $0x10] sm:$0xff]
        %v214 = vld [vmem:[%s203 + $0x18] sm:$0xff]
        %v215 = vld [vmem:[%s203 + $0x20] sm:$0xff]
        %v216 = vld [vmem:[%s203 + $0x28] sm:$0xff]
        %v217 = vld [vmem:[%s203 + $0x30] sm:$0xff]
        %v218 = vld [vmem:[%s203 + $0x38] sm:$0xff]
        %v219 = vld [vmem:[%s203 + $0x40] sm:$0xff]
        %v220 = vld [vmem:[%s203 + $0x48] sm:$0xff]
        %v221 = vld [vmem:[%s203 + $0x50] sm:$0xff]
        %v222 = vld [vmem:[%s203 + $0x58] sm:$0xff]
        %v223 = vld [vmem:[%s203 + $0x60] sm:$0xff]
        %v224 = vld [vmem:[%s203 + $0x68] sm:$0xff]
        %v225 = vld [vmem:[%s203 + $0x70] sm:$0xff]
        %v226 = vld [vmem:[%s203 + $0x78] sm:$0xff]
        %v227 = vld [vmem:[%s203 + $0x80] sm:$0xff]
        %v228 = vld [vmem:[%s203 + $0x88] sm:$0xff]
        %v229 = vld [vmem:[%s203 + $0x90] sm:$0xff]
        %v230 = vld [vmem:[%s203 + $0x98] sm:$0xff]
        %v231 = vld [vmem:[%s203 + $0xa0] sm:$0xff]
        %v232 = vld [vmem:[%s203 + $0xa8] sm:$0xff]
        %v233 = vld [vmem:[%s203 + $0xb0] sm:$0xff]
        %v234 = vld [vmem:[%s203 + $0xb8] sm:$0xff]
        %v235 = vld [vmem:[%s203 + $0xc0] sm:$0xff]
        %v236 = vld [vmem:[%s203 + $0xc8] sm:$0xff]
        %v237 = vld [vmem:[%s203 + $0xd0] sm:$0xff]
        %v238 = vld [vmem:[%s203 + $0xd8] sm:$0xff]
        %v239 = vld [vmem:[%s203 + $0xe0] sm:$0xff]
        %v240 = vld [vmem:[%s203 + $0xe8] sm:$0xff]
        %v241 = vld [vmem:[%s203 + $0xf0] sm:$0xff]
        %v242 = vld [vmem:[%s203 + $0xf8] sm:$0xff]
        %v243 = vld [vmem:[%s1] sm:$0xff]
        %v244 = vld [vmem:[%s1 + $0x8] sm:$0xff]
        %v245 = vld [vmem:[%s1 + $0x10] sm:$0xff]
        %v246 = vld [vmem:[%s1 + $0x18] sm:$0xff]
        %v247 = vld [vmem:[%s1 + $0x20] sm:$0xff]
        %v248 = vld [vmem:[%s1 + $0x28] sm:$0xff]
        %v249 = vld [vmem:[%s1 + $0x30] sm:$0xff]
        %v250 = vld [vmem:[%s1 + $0x38] sm:$0xff]
        %v251 = vld [vmem:[%s1 + $0x40] sm:$0xff]
        %v252 = vld [vmem:[%s1 + $0x48] sm:$0xff]
        %v253 = vld [vmem:[%s1 + $0x50] sm:$0xff]
        %v254 = vld [vmem:[%s1 + $0x58] sm:$0xff]
        %v255 = vld [vmem:[%s1 + $0x60] sm:$0xff]
        %v256 = vld [vmem:[%s1 + $0x68] sm:$0xff]
        %v257 = vld [vmem:[%s1 + $0x70] sm:$0xff]
        %v258 = vld [vmem:[%s1 + $0x78] sm:$0xff]
        %vm259 = vcmask 130048
        %v261 = vsel %vm259, %v211, 0
        %v264 = vsel %vm259, %v212, 0
        %v267 = vsel %vm259, %v213, 0
        %v270 = vsel %vm259, %v214, 0
        %v273 = vsel %vm259, %v215, 0
        %v276 = vsel %vm259, %v216, 0
        %v279 = vsel %vm259, %v217, 0
        %v282 = vsel %vm259, %v218, 0
        %v285 = vsel %vm259, %v219, 0
        %v288 = vsel %vm259, %v220, 0
        %v291 = vsel %vm259, %v221, 0
        %v294 = vsel %vm259, %v222, 0
        %v297 = vsel %vm259, %v223, 0
        %v300 = vsel %vm259, %v224, 0
        %v303 = vsel %vm259, %v225, 0
        %v306 = vsel %vm259, %v226, 0
        %v309 = vsel %vm259, %v227, 0
        %v312 = vsel %vm259, %v228, 0
        %v315 = vsel %vm259, %v229, 0
        %v318 = vsel %vm259, %v230, 0
        %v321 = vsel %vm259, %v231, 0
        %v324 = vsel %vm259, %v232, 0
        %v327 = vsel %vm259, %v233, 0
        %v330 = vsel %vm259, %v234, 0
        %v333 = vsel %vm259, %v235, 0
        %v336 = vsel %vm259, %v236, 0
        %v339 = vsel %vm259, %v237, 0
        %v342 = vsel %vm259, %v238, 0
        %v345 = vsel %vm259, %v239, 0
        %v348 = vsel %vm259, %v240, 0
        %v351 = vsel %vm259, %v241, 0
        %v354 = vsel %vm259, %v242, 0
        %v357 = vsel %vm259, %v243, 0
        %v360 = vsel %vm259, %v244, 0
        %v363 = vsel %vm259, %v245, 0
        %v366 = vsel %vm259, %v246, 0
        %v369 = vsel %vm259, %v247, 0
        %v372 = vsel %vm259, %v248, 0
        %v375 = vsel %vm259, %v249, 0
        %v378 = vsel %vm259, %v250, 0
        %v381 = vsel %vm259, %v251, 0
        %v384 = vsel %vm259, %v252, 0
        %v387 = vsel %vm259, %v253, 0
        %v390 = vsel %vm259, %v254, 0
        %v393 = vsel %vm259, %v255, 0
        %v396 = vsel %vm259, %v256, 0
        %v399 = vsel %vm259, %v257, 0
        %v402 = vsel %vm259, %v258, 0
        %404 = vmatprep.subr.mxu0 0.0
        %405 = vmatpush1.xpose.msra.mxu0 %v357
        %406 = vmatprep.subr.mxu0 0.0
        %407 = vmatpush1.xpose.msra.mxu0 %v360
        %408 = vmatprep.subr.mxu0 0.0
        %409 = vmatpush1.xpose.msra.mxu0 %v363
        %410 = vmatprep.subr.mxu0 0.0
        %411 = vmatpush1.xpose.msra.mxu0 %v366
        %412 = vmatprep.subr.mxu0 0.0
        %413 = vmatpush1.xpose.msra.mxu0 %v369
        %414 = vmatprep.subr.mxu0 0.0
        %415 = vmatpush1.xpose.msra.mxu0 %v372
        %416 = vmatprep.subr.mxu0 0.0
        %417 = vmatpush1.xpose.msra.mxu0 %v375
        %418 = vmatprep.subr.mxu0 0.0
        %419 = vmatpush1.xpose.msra.mxu0 %v378
        %420 = vmatprep.subr.mxu0 0.0
        %421 = vmatpush1.xpose.msra.mxu0 %v381
        %422 = vmatprep.subr.mxu0 0.0
        %423 = vmatpush1.xpose.msra.mxu0 %v384
        %424 = vmatprep.subr.mxu0 0.0
        %425 = vmatpush1.xpose.msra.mxu0 %v387
        %426 = vmatprep.subr.mxu0 0.0
        %427 = vmatpush1.xpose.msra.mxu0 %v390
        %428 = vmatprep.subr.mxu0 0.0
        %429 = vmatpush1.xpose.msra.mxu0 %v393
        %430 = vmatprep.subr.mxu0 0.0
        %431 = vmatpush1.xpose.msra.mxu0 %v396
        %432 = vmatprep.subr.mxu0 0.0
        %433 = vmatpush1.xpose.msra.mxu0 %v399
        %434 = vmatprep.subr.mxu0 0.0
        %435 = vmatpush1.xpose.msra.mxu0 %v402
        %436 = vmatprep.subr.mxu0 0.0
        %437 = vmatpush1.xpose.msra.mxu0 0.0
        %438 = vmatprep.subr.mxu0 0.0
        %439 = vmatpush1.xpose.msra.mxu0 0.0
        %440 = vmatprep.subr.mxu0 0.0
        %441 = vmatpush1.xpose.msra.mxu0 0.0
        %442 = vmatprep.subr.mxu0 0.0
        %443 = vmatpush1.xpose.msra.mxu0 0.0
        %444 = vmatprep.subr.mxu0 0.0
        %445 = vmatpush1.xpose.msra.mxu0 0.0
        %446 = vmatprep.subr.mxu0 0.0
        %447 = vmatpush1.xpose.msra.mxu0 0.0
        %448 = vmatprep.subr.mxu0 0.0
        %449 = vmatpush1.xpose.msra.mxu0 0.0
        %450 = vmatprep.subr.mxu0 0.0
        %451 = vmatpush1.xpose.msra.mxu0 0.0
        %452 = vmatprep.subr.mxu0 0.0
        %453 = vmatpush1.xpose.msra.mxu0 0.0
        %454 = vmatprep.subr.mxu0 0.0
        %455 = vmatpush1.xpose.msra.mxu0 0.0
        %456 = vmatprep.subr.mxu0 0.0
        %457 = vmatpush1.xpose.msra.mxu0 0.0
        %458 = vmatprep.subr.mxu0 0.0
        %459 = vmatpush1.xpose.msra.mxu0 0.0
        %460 = vmatprep.subr.mxu0 0.0
        %461 = vmatpush1.xpose.msra.mxu0 0.0
        %462 = vmatprep.subr.mxu0 0.0
        %463 = vmatpush1.xpose.msra.mxu0 0.0
        %464 = vmatprep.subr.mxu0 0.0
        %465 = vmatpush1.xpose.msra.mxu0 0.0
        %466 = vmatprep.subr.mxu0 0.0
        %467 = vmatpush1.xpose.msra.mxu0 0.0
        %468 = vmatprep.mubr.f32.mxu0 0.0
        %469 = vmatmul.mubr.f32.gmra.mrb[0].mxu0 %v261
        %v470 = vpop.f32.mrb[0].mxu0
        %v471 = vadd.f32 0.0, %v470
        %v472 = vpop.f32.mrb[0].mxu0
        %473 = vmatprep.mubr.f32.mxu0 0.0
        %474 = vmatmul.mubr.f32.gmra.mrb[0].mxu0 %v264
        %v475 = vpop.f32.mrb[0].mxu0
        %v476 = vadd.f32 0.0, %v475
        %v477 = vpop.f32.mrb[0].mxu0
        %478 = vmatprep.mubr.f32.mxu0 0.0
        %479 = vmatmul.mubr.f32.gmra.mrb[0].mxu0 %v267
        %v480 = vpop.f32.mrb[0].mxu0
        %v481 = vadd.f32 0.0, %v480
        %v482 = vpop.f32.mrb[0].mxu0
        %483 = vmatprep.mubr.f32.mxu0 0.0
        %484 = vmatmul.mubr.f32.gmra.mrb[0].mxu0 %v270
        %v485 = vpop.f32.mrb[0].mxu0
        %v486 = vadd.f32 0.0, %v485
        %v487 = vpop.f32.mrb[0].mxu0
        %488 = vmatprep.mubr.f32.mxu0 0.0
        %489 = vmatmul.mubr.f32.gmra.mrb[0].mxu0 %v273
        %v490 = vpop.f32.mrb[0].mxu0
        %v491 = vadd.f32 0.0, %v490
        %v492 = vpop.f32.mrb[0].mxu0
        %493 = vmatprep.mubr.f32.mxu0 0.0
        %494 = vmatmul.mubr.f32.gmra.mrb[0].mxu0 %v276
        %v495 = vpop.f32.mrb[0].mxu0
        %v496 = vadd.f32 0.0, %v495
        %v497 = vpop.f32.mrb[0].mxu0
        %498 = vmatprep.mubr.f32.mxu0 0.0
        %499 = vmatmul.mubr.f32.gmra.mrb[0].mxu0 %v279
        %v500 = vpop.f32.mrb[0].mxu0
        %v501 = vadd.f32 0.0, %v500
        %v502 = vpop.f32.mrb[0].mxu0
        %503 = vmatprep.mubr.f32.mxu0 0.0
        %504 = vmatmul.mubr.f32.gmra.mrb[0].mxu0 %v282
        %v505 = vpop.f32.mrb[0].mxu0
        %v506 = vadd.f32 0.0, %v505
        %v507 = vpop.f32.mrb[0].mxu0
        %508 = vmatprep.mubr.f32.mxu0 0.0
        %509 = vmatmul.mubr.f32.gmra.mrb[0].mxu0 %v285
        %v510 = vpop.f32.mrb[0].mxu0
        %v511 = vadd.f32 0.0, %v510
        %v512 = vpop.f32.mrb[0].mxu0
        %513 = vmatprep.mubr.f32.mxu0 0.0
        %514 = vmatmul.mubr.f32.gmra.mrb[0].mxu0 %v288
        %v515 = vpop.f32.mrb[0].mxu0
        %v516 = vadd.f32 0.0, %v515
        %v517 = vpop.f32.mrb[0].mxu0
        %518 = vmatprep.mubr.f32.mxu0 0.0
        %519 = vmatmul.mubr.f32.gmra.mrb[0].mxu0 %v291
        %v520 = vpop.f32.mrb[0].mxu0
        %v521 = vadd.f32 0.0, %v520
        %v522 = vpop.f32.mrb[0].mxu0
        %523 = vmatprep.mubr.f32.mxu0 0.0
        %524 = vmatmul.mubr.f32.gmra.mrb[0].mxu0 %v294
        %v525 = vpop.f32.mrb[0].mxu0
        %v526 = vadd.f32 0.0, %v525
        %v527 = vpop.f32.mrb[0].mxu0
        %528 = vmatprep.mubr.f32.mxu0 0.0
        %529 = vmatmul.mubr.f32.gmra.mrb[0].mxu0 %v297
        %v530 = vpop.f32.mrb[0].mxu0
        %v531 = vadd.f32 0.0, %v530
        %v532 = vpop.f32.mrb[0].mxu0
        %533 = vmatprep.mubr.f32.mxu0 0.0
        %534 = vmatmul.mubr.f32.gmra.mrb[0].mxu0 %v300
        %v535 = vpop.f32.mrb[0].mxu0
        %v536 = vadd.f32 0.0, %v535
        %v537 = vpop.f32.mrb[0].mxu0
        %538 = vmatprep.mubr.f32.mxu0 0.0
        %539 = vmatmul.mubr.f32.gmra.mrb[0].mxu0 %v303
        %v540 = vpop.f32.mrb[0].mxu0
        %v541 = vadd.f32 0.0, %v540
        %v542 = vpop.f32.mrb[0].mxu0
        %543 = vmatprep.mubr.f32.mxu0 0.0
        %544 = vmatmul.mubr.f32.gmra.mrb[0].mxu0 %v306
        %v545 = vpop.f32.mrb[0].mxu0
        %v546 = vadd.f32 0.0, %v545
        %v547 = vpop.f32.mrb[0].mxu0
        %548 = vmatprep.mubr.f32.mxu0 0.0
        %549 = vmatmul.mubr.f32.gmra.mrb[0].mxu0 %v309
        %v550 = vpop.f32.mrb[0].mxu0
        %v551 = vadd.f32 0.0, %v550
        %v552 = vpop.f32.mrb[0].mxu0
        %553 = vmatprep.mubr.f32.mxu0 0.0
        %554 = vmatmul.mubr.f32.gmra.mrb[0].mxu0 %v312
        %v555 = vpop.f32.mrb[0].mxu0
        %v556 = vadd.f32 0.0, %v555
        %v557 = vpop.f32.mrb[0].mxu0
        %558 = vmatprep.mubr.f32.mxu0 0.0
        %559 = vmatmul.mubr.f32.gmra.mrb[0].mxu0 %v315
        %v560 = vpop.f32.mrb[0].mxu0
        %v561 = vadd.f32 0.0, %v560
        %v562 = vpop.f32.mrb[0].mxu0
        %563 = vmatprep.mubr.f32.mxu0 0.0
        %564 = vmatmul.mubr.f32.gmra.mrb[0].mxu0 %v318
        %v565 = vpop.f32.mrb[0].mxu0
        %v566 = vadd.f32 0.0, %v565
        %v567 = vpop.f32.mrb[0].mxu0
        %568 = vmatprep.mubr.f32.mxu0 0.0
        %569 = vmatmul.mubr.f32.gmra.mrb[0].mxu0 %v321
        %v570 = vpop.f32.mrb[0].mxu0
        %v571 = vadd.f32 0.0, %v570
        %v572 = vpop.f32.mrb[0].mxu0
        %573 = vmatprep.mubr.f32.mxu0 0.0
        %574 = vmatmul.mubr.f32.gmra.mrb[0].mxu0 %v324
        %v575 = vpop.f32.mrb[0].mxu0
        %v576 = vadd.f32 0.0, %v575
        %v577 = vpop.f32.mrb[0].mxu0
        %578 = vmatprep.mubr.f32.mxu0 0.0
        %579 = vmatmul.mubr.f32.gmra.mrb[0].mxu0 %v327
        %v580 = vpop.f32.mrb[0].mxu0
        %v581 = vadd.f32 0.0, %v580
        %v582 = vpop.f32.mrb[0].mxu0
        %583 = vmatprep.mubr.f32.mxu0 0.0
        %584 = vmatmul.mubr.f32.gmra.mrb[0].mxu0 %v330
        %v585 = vpop.f32.mrb[0].mxu0
        %v586 = vadd.f32 0.0, %v585
        %v587 = vpop.f32.mrb[0].mxu0
        %588 = vmatprep.mubr.f32.mxu0 0.0
        %589 = vmatmul.mubr.f32.gmra.mrb[0].mxu0 %v333
        %v590 = vpop.f32.mrb[0].mxu0
        %v591 = vadd.f32 0.0, %v590
        %v592 = vpop.f32.mrb[0].mxu0
        %593 = vmatprep.mubr.f32.mxu0 0.0
        %594 = vmatmul.mubr.f32.gmra.mrb[0].mxu0 %v336
        %v595 = vpop.f32.mrb[0].mxu0
        %v596 = vadd.f32 0.0, %v595
        %v597 = vpop.f32.mrb[0].mxu0
        %598 = vmatprep.mubr.f32.mxu0 0.0
        %599 = vmatmul.mubr.f32.gmra.mrb[0].mxu0 %v339
        %v600 = vpop.f32.mrb[0].mxu0
        %v601 = vadd.f32 0.0, %v600
        %v602 = vpop.f32.mrb[0].mxu0
        %603 = vmatprep.mubr.f32.mxu0 0.0
        %604 = vmatmul.mubr.f32.gmra.mrb[0].mxu0 %v342
        %v605 = vpop.f32.mrb[0].mxu0
        %v606 = vadd.f32 0.0, %v605
        %v607 = vpop.f32.mrb[0].mxu0
        %608 = vmatprep.mubr.f32.mxu0 0.0
        %609 = vmatmul.mubr.f32.gmra.mrb[0].mxu0 %v345
        %v610 = vpop.f32.mrb[0].mxu0
        %v611 = vadd.f32 0.0, %v610
        %v612 = vpop.f32.mrb[0].mxu0
        %613 = vmatprep.mubr.f32.mxu0 0.0
        %614 = vmatmul.mubr.f32.gmra.mrb[0].mxu0 %v348
        %v615 = vpop.f32.mrb[0].mxu0
        %v616 = vadd.f32 0.0, %v615
        %v617 = vpop.f32.mrb[0].mxu0
        %618 = vmatprep.mubr.f32.mxu0 0.0
        %619 = vmatmul.mubr.f32.gmra.mrb[0].mxu0 %v351
        %v620 = vpop.f32.mrb[0].mxu0
        %v621 = vadd.f32 0.0, %v620
        %v622 = vpop.f32.mrb[0].mxu0
        %623 = vmatprep.mubr.f32.mxu0 0.0
        %624 = vmatmul.mubr.f32.gmra.mrb[0].mxu0 %v354
        %v625 = vpop.f32.mrb[0].mxu0
        %v626 = vadd.f32 0.0, %v625
        %v627 = vpop.f32.mrb[0].mxu0
        %628 = vdwg.mxu0
        %v629 = vld [vmem:[%s2] sm:$0x1]
        %v630 = vmul.f32 %v471, 2.0
        %v631 = vmul.f32 %v476, 2.0
        %v632 = vmul.f32 %v481, 2.0
        %v633 = vmul.f32 %v486, 2.0
        %v634 = vmul.f32 %v491, 2.0
        %v635 = vmul.f32 %v496, 2.0
        %v636 = vmul.f32 %v501, 2.0
        %v637 = vmul.f32 %v506, 2.0
        %v638 = vmul.f32 %v511, 2.0
        %v639 = vmul.f32 %v516, 2.0
        %v640 = vmul.f32 %v521, 2.0
        %v641 = vmul.f32 %v526, 2.0
        %v642 = vmul.f32 %v531, 2.0
        %v643 = vmul.f32 %v536, 2.0
        %v644 = vmul.f32 %v541, 2.0
        %v645 = vmul.f32 %v546, 2.0
        %v646 = vmul.f32 %v551, 2.0
        %v647 = vmul.f32 %v556, 2.0
        %v648 = vmul.f32 %v561, 2.0
        %v649 = vmul.f32 %v566, 2.0
        %v650 = vmul.f32 %v571, 2.0
        %v651 = vmul.f32 %v576, 2.0
        %v652 = vmul.f32 %v581, 2.0
        %v653 = vmul.f32 %v586, 2.0
        %v654 = vmul.f32 %v591, 2.0
        %v655 = vmul.f32 %v596, 2.0
        %v656 = vmul.f32 %v601, 2.0
        %v657 = vmul.f32 %v606, 2.0
        %v658 = vmul.f32 %v611, 2.0
        %v659 = vmul.f32 %v616, 2.0
        %v660 = vmul.f32 %v621, 2.0
        %v661 = vmul.f32 %v626, 2.0
        %v663 = vlaneseq
        %v664 = vshrl.u32 %v663, 7
        %v665 = vsub.s32 0, %v664
        %v666 = vrot.slane %v629, %v665
        %v668 = vsub.f32 %v666, %v630
        %v669 = vsub.f32 %v666, %v631
        %v670 = vsub.f32 %v666, %v632
        %v671 = vsub.f32 %v666, %v633
        %v672 = vsub.f32 %v666, %v634
        %v673 = vsub.f32 %v666, %v635
        %v674 = vsub.f32 %v666, %v636
        %v675 = vsub.f32 %v666, %v637
        %v676 = vsub.f32 %v666, %v638
        %v677 = vsub.f32 %v666, %v639
        %v678 = vsub.f32 %v666, %v640
        %v679 = vsub.f32 %v666, %v641
        %v680 = vsub.f32 %v666, %v642
        %v681 = vsub.f32 %v666, %v643
        %v682 = vsub.f32 %v666, %v644
        %v683 = vsub.f32 %v666, %v645
        %v684 = vsub.f32 %v666, %v646
        %v685 = vsub.f32 %v666, %v647
        %v686 = vsub.f32 %v666, %v648
        %v687 = vsub.f32 %v666, %v649
        %v688 = vsub.f32 %v666, %v650
        %v689 = vsub.f32 %v666, %v651
        %v690 = vsub.f32 %v666, %v652
        %v691 = vsub.f32 %v666, %v653
        %v692 = vsub.f32 %v666, %v654
        %v693 = vsub.f32 %v666, %v655
        %v694 = vsub.f32 %v666, %v656
        %v695 = vsub.f32 %v666, %v657
        %v696 = vsub.f32 %v666, %v658
        %v697 = vsub.f32 %v666, %v659
        %v698 = vsub.f32 %v666, %v660
        %v699 = vsub.f32 %v666, %v661
        %700 = vmin.xlane.f32.xlu0 %v668
        %v701 = vpop.xlane.xlu0 %700
        %702 = vmin.xlane.f32.xlu0 %v669
        %v703 = vpop.xlane.xlu0 %702
        %704 = vmin.xlane.f32.xlu0 %v670
        %v705 = vpop.xlane.xlu0 %704
        %706 = vmin.xlane.f32.xlu0 %v671
        %v707 = vpop.xlane.xlu0 %706
        %708 = vmin.xlane.f32.xlu0 %v672
        %v709 = vpop.xlane.xlu0 %708
        %710 = vmin.xlane.f32.xlu0 %v673
        %v711 = vpop.xlane.xlu0 %710
        %712 = vmin.xlane.f32.xlu0 %v674
        %v713 = vpop.xlane.xlu0 %712
        %714 = vmin.xlane.f32.xlu0 %v675
        %v715 = vpop.xlane.xlu0 %714
        %716 = vmin.xlane.f32.xlu0 %v676
        %v717 = vpop.xlane.xlu0 %716
        %718 = vmin.xlane.f32.xlu0 %v677
        %v719 = vpop.xlane.xlu0 %718
        %720 = vmin.xlane.f32.xlu0 %v678
        %v721 = vpop.xlane.xlu0 %720
        %722 = vmin.xlane.f32.xlu0 %v679
        %v723 = vpop.xlane.xlu0 %722
        %724 = vmin.xlane.f32.xlu0 %v680
        %v725 = vpop.xlane.xlu0 %724
        %726 = vmin.xlane.f32.xlu0 %v681
        %v727 = vpop.xlane.xlu0 %726
        %728 = vmin.xlane.f32.xlu0 %v682
        %v729 = vpop.xlane.xlu0 %728
        %730 = vmin.xlane.f32.xlu0 %v683
        %v731 = vpop.xlane.xlu0 %730
        %732 = vmin.xlane.f32.xlu0 %v684
        %v733 = vpop.xlane.xlu0 %732
        %734 = vmin.xlane.f32.xlu0 %v685
        %v735 = vpop.xlane.xlu0 %734
        %736 = vmin.xlane.f32.xlu0 %v686
        %v737 = vpop.xlane.xlu0 %736
        %738 = vmin.xlane.f32.xlu0 %v687
        %v739 = vpop.xlane.xlu0 %738
        %740 = vmin.xlane.f32.xlu0 %v688
        %v741 = vpop.xlane.xlu0 %740
        %742 = vmin.xlane.f32.xlu0 %v689
        %v743 = vpop.xlane.xlu0 %742
        %744 = vmin.xlane.f32.xlu0 %v690
        %v745 = vpop.xlane.xlu0 %744
        %746 = vmin.xlane.f32.xlu0 %v691
        %v747 = vpop.xlane.xlu0 %746
        %748 = vmin.xlane.f32.xlu0 %v692
        %v749 = vpop.xlane.xlu0 %748
        %750 = vmin.xlane.f32.xlu0 %v693
        %v751 = vpop.xlane.xlu0 %750
        %752 = vmin.xlane.f32.xlu0 %v694
        %v753 = vpop.xlane.xlu0 %752
        %754 = vmin.xlane.f32.xlu0 %v695
        %v755 = vpop.xlane.xlu0 %754
        %756 = vmin.xlane.f32.xlu0 %v696
        %v757 = vpop.xlane.xlu0 %756
        %758 = vmin.xlane.f32.xlu0 %v697
        %v759 = vpop.xlane.xlu0 %758
        %760 = vmin.xlane.f32.xlu0 %v698
        %v761 = vpop.xlane.xlu0 %760
        %762 = vmin.xlane.f32.xlu0 %v699
        %v763 = vpop.xlane.xlu0 %762
        %v764 = vlaneseq
        %v765 = vand.u32 %v764, 127
        %vm766 = vcmp.eq.f32.partialorder %v668, %v701
        %vm767 = vcmp.eq.f32.partialorder %v669, %v703
        %vm768 = vcmp.eq.f32.partialorder %v670, %v705
        %vm769 = vcmp.eq.f32.partialorder %v671, %v707
        %vm770 = vcmp.eq.f32.partialorder %v672, %v709
        %vm771 = vcmp.eq.f32.partialorder %v673, %v711
        %vm772 = vcmp.eq.f32.partialorder %v674, %v713
        %vm773 = vcmp.eq.f32.partialorder %v675, %v715
        %vm774 = vcmp.eq.f32.partialorder %v676, %v717
        %vm775 = vcmp.eq.f32.partialorder %v677, %v719
        %vm776 = vcmp.eq.f32.partialorder %v678, %v721
        %vm777 = vcmp.eq.f32.partialorder %v679, %v723
        %vm778 = vcmp.eq.f32.partialorder %v680, %v725
        %vm779 = vcmp.eq.f32.partialorder %v681, %v727
        %vm780 = vcmp.eq.f32.partialorder %v682, %v729
        %vm781 = vcmp.eq.f32.partialorder %v683, %v731
        %vm782 = vcmp.eq.f32.partialorder %v684, %v733
        %vm783 = vcmp.eq.f32.partialorder %v685, %v735
        %vm784 = vcmp.eq.f32.partialorder %v686, %v737
        %vm785 = vcmp.eq.f32.partialorder %v687, %v739
        %vm786 = vcmp.eq.f32.partialorder %v688, %v741
        %vm787 = vcmp.eq.f32.partialorder %v689, %v743
        %vm788 = vcmp.eq.f32.partialorder %v690, %v745
        %vm789 = vcmp.eq.f32.partialorder %v691, %v747
        %vm790 = vcmp.eq.f32.partialorder %v692, %v749
        %vm791 = vcmp.eq.f32.partialorder %v693, %v751
        %vm792 = vcmp.eq.f32.partialorder %v694, %v753
        %vm793 = vcmp.eq.f32.partialorder %v695, %v755
        %vm794 = vcmp.eq.f32.partialorder %v696, %v757
        %vm795 = vcmp.eq.f32.partialorder %v697, %v759
        %vm796 = vcmp.eq.f32.partialorder %v698, %v761
        %vm797 = vcmp.eq.f32.partialorder %v699, %v763
        %v798 = vsel %vm766, %v765, 128
        %v799 = vsel %vm767, %v765, 128
        %v800 = vsel %vm768, %v765, 128
        %v801 = vsel %vm769, %v765, 128
        %v802 = vsel %vm770, %v765, 128
        %v803 = vsel %vm771, %v765, 128
        %v804 = vsel %vm772, %v765, 128
        %v805 = vsel %vm773, %v765, 128
        %v806 = vsel %vm774, %v765, 128
        %v807 = vsel %vm775, %v765, 128
        %v808 = vsel %vm776, %v765, 128
        %v809 = vsel %vm777, %v765, 128
        %v810 = vsel %vm778, %v765, 128
        %v811 = vsel %vm779, %v765, 128
        %v812 = vsel %vm780, %v765, 128
        %v813 = vsel %vm781, %v765, 128
        %v814 = vsel %vm782, %v765, 128
        %v815 = vsel %vm783, %v765, 128
        %v816 = vsel %vm784, %v765, 128
        %v817 = vsel %vm785, %v765, 128
        %v818 = vsel %vm786, %v765, 128
        %v819 = vsel %vm787, %v765, 128
        %v820 = vsel %vm788, %v765, 128
        %v821 = vsel %vm789, %v765, 128
        %v822 = vsel %vm790, %v765, 128
        %v823 = vsel %vm791, %v765, 128
        %v824 = vsel %vm792, %v765, 128
        %v825 = vsel %vm793, %v765, 128
        %v826 = vsel %vm794, %v765, 128
        %v827 = vsel %vm795, %v765, 128
        %v828 = vsel %vm796, %v765, 128
        %v829 = vsel %vm797, %v765, 128
        %v830 = vand.u32 %v798, 65535
        %v831 = vshra.s32 %v798, 16
        %v832 = vcvt.s32.f32 %v830
        %v833 = vcvt.s32.f32 %v831
        %834 = vmin.xlane.f32.xlu0 %v833
        %v835 = vpop.xlane.xlu0 %834
        %vm836 = vcmp.eq.f32.partialorder %v833, %v835
        %v837 = vsel %vm836, %v832, inf
        %838 = vmin.xlane.f32.xlu0 %v837
        %v839 = vpop.xlane.xlu0 %838
        %v840 = vcvt.f32.s32 %v839
        %v841 = vcvt.f32.s32 %v835
        %v842 = vshll.u32 %v841, 16
        %v843 = vadd.s32 %v842, %v840
        %v844 = vand.u32 %v799, 65535
        %v845 = vshra.s32 %v799, 16
        %v846 = vcvt.s32.f32 %v844
        %v847 = vcvt.s32.f32 %v845
        %848 = vmin.xlane.f32.xlu0 %v847
        %v849 = vpop.xlane.xlu0 %848
        %vm850 = vcmp.eq.f32.partialorder %v847, %v849
        %v851 = vsel %vm850, %v846, inf
        %852 = vmin.xlane.f32.xlu0 %v851
        %v853 = vpop.xlane.xlu0 %852
        %v854 = vcvt.f32.s32 %v853
        %v855 = vcvt.f32.s32 %v849
        %v856 = vshll.u32 %v855, 16
        %v857 = vadd.s32 %v856, %v854
        %v858 = vand.u32 %v800, 65535
        %v859 = vshra.s32 %v800, 16
        %v860 = vcvt.s32.f32 %v858
        %v861 = vcvt.s32.f32 %v859
        %862 = vmin.xlane.f32.xlu0 %v861
        %v863 = vpop.xlane.xlu0 %862
        %vm864 = vcmp.eq.f32.partialorder %v861, %v863
        %v865 = vsel %vm864, %v860, inf
        %866 = vmin.xlane.f32.xlu0 %v865
        %v867 = vpop.xlane.xlu0 %866
        %v868 = vcvt.f32.s32 %v867
        %v869 = vcvt.f32.s32 %v863
        %v870 = vshll.u32 %v869, 16
        %v871 = vadd.s32 %v870, %v868
        %v872 = vand.u32 %v801, 65535
        %v873 = vshra.s32 %v801, 16
        %v874 = vcvt.s32.f32 %v872
        %v875 = vcvt.s32.f32 %v873
        %876 = vmin.xlane.f32.xlu0 %v875
        %v877 = vpop.xlane.xlu0 %876
        %vm878 = vcmp.eq.f32.partialorder %v875, %v877
        %v879 = vsel %vm878, %v874, inf
        %880 = vmin.xlane.f32.xlu0 %v879
        %v881 = vpop.xlane.xlu0 %880
        %v882 = vcvt.f32.s32 %v881
        %v883 = vcvt.f32.s32 %v877
        %v884 = vshll.u32 %v883, 16
        %v885 = vadd.s32 %v884, %v882
        %v886 = vand.u32 %v802, 65535
        %v887 = vshra.s32 %v802, 16
        %v888 = vcvt.s32.f32 %v886
        %v889 = vcvt.s32.f32 %v887
        %890 = vmin.xlane.f32.xlu0 %v889
        %v891 = vpop.xlane.xlu0 %890
        %vm892 = vcmp.eq.f32.partialorder %v889, %v891
        %v893 = vsel %vm892, %v888, inf
        %894 = vmin.xlane.f32.xlu0 %v893
        %v895 = vpop.xlane.xlu0 %894
        %v896 = vcvt.f32.s32 %v895
        %v897 = vcvt.f32.s32 %v891
        %v898 = vshll.u32 %v897, 16
        %v899 = vadd.s32 %v898, %v896
        %v900 = vand.u32 %v803, 65535
        %v901 = vshra.s32 %v803, 16
        %v902 = vcvt.s32.f32 %v900
        %v903 = vcvt.s32.f32 %v901
        %904 = vmin.xlane.f32.xlu0 %v903
        %v905 = vpop.xlane.xlu0 %904
        %vm906 = vcmp.eq.f32.partialorder %v903, %v905
        %v907 = vsel %vm906, %v902, inf
        %908 = vmin.xlane.f32.xlu0 %v907
        %v909 = vpop.xlane.xlu0 %908
        %v910 = vcvt.f32.s32 %v909
        %v911 = vcvt.f32.s32 %v905
        %v912 = vshll.u32 %v911, 16
        %v913 = vadd.s32 %v912, %v910
        %v914 = vand.u32 %v804, 65535
        %v915 = vshra.s32 %v804, 16
        %v916 = vcvt.s32.f32 %v914
        %v917 = vcvt.s32.f32 %v915
        %918 = vmin.xlane.f32.xlu0 %v917
        %v919 = vpop.xlane.xlu0 %918
        %vm920 = vcmp.eq.f32.partialorder %v917, %v919
        %v921 = vsel %vm920, %v916, inf
        %922 = vmin.xlane.f32.xlu0 %v921
        %v923 = vpop.xlane.xlu0 %922
        %v924 = vcvt.f32.s32 %v923
        %v925 = vcvt.f32.s32 %v919
        %v926 = vshll.u32 %v925, 16
        %v927 = vadd.s32 %v926, %v924
        %v928 = vand.u32 %v805, 65535
        %v929 = vshra.s32 %v805, 16
        %v930 = vcvt.s32.f32 %v928
        %v931 = vcvt.s32.f32 %v929
        %932 = vmin.xlane.f32.xlu0 %v931
        %v933 = vpop.xlane.xlu0 %932
        %vm934 = vcmp.eq.f32.partialorder %v931, %v933
        %v935 = vsel %vm934, %v930, inf
        %936 = vmin.xlane.f32.xlu0 %v935
        %v937 = vpop.xlane.xlu0 %936
        %v938 = vcvt.f32.s32 %v937
        %v939 = vcvt.f32.s32 %v933
        %v940 = vshll.u32 %v939, 16
        %v941 = vadd.s32 %v940, %v938
        %v942 = vand.u32 %v806, 65535
        %v943 = vshra.s32 %v806, 16
        %v944 = vcvt.s32.f32 %v942
        %v945 = vcvt.s32.f32 %v943
        %946 = vmin.xlane.f32.xlu0 %v945
        %v947 = vpop.xlane.xlu0 %946
        %vm948 = vcmp.eq.f32.partialorder %v945, %v947
        %v949 = vsel %vm948, %v944, inf
        %950 = vmin.xlane.f32.xlu0 %v949
        %v951 = vpop.xlane.xlu0 %950
        %v952 = vcvt.f32.s32 %v951
        %v953 = vcvt.f32.s32 %v947
        %v954 = vshll.u32 %v953, 16
        %v955 = vadd.s32 %v954, %v952
        %v956 = vand.u32 %v807, 65535
        %v957 = vshra.s32 %v807, 16
        %v958 = vcvt.s32.f32 %v956
        %v959 = vcvt.s32.f32 %v957
        %960 = vmin.xlane.f32.xlu0 %v959
        %v961 = vpop.xlane.xlu0 %960
        %vm962 = vcmp.eq.f32.partialorder %v959, %v961
        %v963 = vsel %vm962, %v958, inf
        %964 = vmin.xlane.f32.xlu0 %v963
        %v965 = vpop.xlane.xlu0 %964
        %v966 = vcvt.f32.s32 %v965
        %v967 = vcvt.f32.s32 %v961
        %v968 = vshll.u32 %v967, 16
        %v969 = vadd.s32 %v968, %v966
        %v970 = vand.u32 %v808, 65535
        %v971 = vshra.s32 %v808, 16
        %v972 = vcvt.s32.f32 %v970
        %v973 = vcvt.s32.f32 %v971
        %974 = vmin.xlane.f32.xlu0 %v973
        %v975 = vpop.xlane.xlu0 %974
        %vm976 = vcmp.eq.f32.partialorder %v973, %v975
        %v977 = vsel %vm976, %v972, inf
        %978 = vmin.xlane.f32.xlu0 %v977
        %v979 = vpop.xlane.xlu0 %978
        %v980 = vcvt.f32.s32 %v979
        %v981 = vcvt.f32.s32 %v975
        %v982 = vshll.u32 %v981, 16
        %v983 = vadd.s32 %v982, %v980
        %v984 = vand.u32 %v809, 65535
        %v985 = vshra.s32 %v809, 16
        %v986 = vcvt.s32.f32 %v984
        %v987 = vcvt.s32.f32 %v985
        %988 = vmin.xlane.f32.xlu0 %v987
        %v989 = vpop.xlane.xlu0 %988
        %vm990 = vcmp.eq.f32.partialorder %v987, %v989
        %v991 = vsel %vm990, %v986, inf
        %992 = vmin.xlane.f32.xlu0 %v991
        %v993 = vpop.xlane.xlu0 %992
        %v994 = vcvt.f32.s32 %v993
        %v995 = vcvt.f32.s32 %v989
        %v996 = vshll.u32 %v995, 16
        %v997 = vadd.s32 %v996, %v994
        %v998 = vand.u32 %v810, 65535
        %v999 = vshra.s32 %v810, 16
        %v1000 = vcvt.s32.f32 %v998
        %v1001 = vcvt.s32.f32 %v999
        %1002 = vmin.xlane.f32.xlu0 %v1001
        %v1003 = vpop.xlane.xlu0 %1002
        %vm1004 = vcmp.eq.f32.partialorder %v1001, %v1003
        %v1005 = vsel %vm1004, %v1000, inf
        %1006 = vmin.xlane.f32.xlu0 %v1005
        %v1007 = vpop.xlane.xlu0 %1006
        %v1008 = vcvt.f32.s32 %v1007
        %v1009 = vcvt.f32.s32 %v1003
        %v1010 = vshll.u32 %v1009, 16
        %v1011 = vadd.s32 %v1010, %v1008
        %v1012 = vand.u32 %v811, 65535
        %v1013 = vshra.s32 %v811, 16
        %v1014 = vcvt.s32.f32 %v1012
        %v1015 = vcvt.s32.f32 %v1013
        %1016 = vmin.xlane.f32.xlu0 %v1015
        %v1017 = vpop.xlane.xlu0 %1016
        %vm1018 = vcmp.eq.f32.partialorder %v1015, %v1017
        %v1019 = vsel %vm1018, %v1014, inf
        %1020 = vmin.xlane.f32.xlu0 %v1019
        %v1021 = vpop.xlane.xlu0 %1020
        %v1022 = vcvt.f32.s32 %v1021
        %v1023 = vcvt.f32.s32 %v1017
        %v1024 = vshll.u32 %v1023, 16
        %v1025 = vadd.s32 %v1024, %v1022
        %v1026 = vand.u32 %v812, 65535
        %v1027 = vshra.s32 %v812, 16
        %v1028 = vcvt.s32.f32 %v1026
        %v1029 = vcvt.s32.f32 %v1027
        %1030 = vmin.xlane.f32.xlu0 %v1029
        %v1031 = vpop.xlane.xlu0 %1030
        %vm1032 = vcmp.eq.f32.partialorder %v1029, %v1031
        %v1033 = vsel %vm1032, %v1028, inf
        %1034 = vmin.xlane.f32.xlu0 %v1033
        %v1035 = vpop.xlane.xlu0 %1034
        %v1036 = vcvt.f32.s32 %v1035
        %v1037 = vcvt.f32.s32 %v1031
        %v1038 = vshll.u32 %v1037, 16
        %v1039 = vadd.s32 %v1038, %v1036
        %v1040 = vand.u32 %v813, 65535
        %v1041 = vshra.s32 %v813, 16
        %v1042 = vcvt.s32.f32 %v1040
        %v1043 = vcvt.s32.f32 %v1041
        %1044 = vmin.xlane.f32.xlu0 %v1043
        %v1045 = vpop.xlane.xlu0 %1044
        %vm1046 = vcmp.eq.f32.partialorder %v1043, %v1045
        %v1047 = vsel %vm1046, %v1042, inf
        %1048 = vmin.xlane.f32.xlu0 %v1047
        %v1049 = vpop.xlane.xlu0 %1048
        %v1050 = vcvt.f32.s32 %v1049
        %v1051 = vcvt.f32.s32 %v1045
        %v1052 = vshll.u32 %v1051, 16
        %v1053 = vadd.s32 %v1052, %v1050
        %v1054 = vand.u32 %v814, 65535
        %v1055 = vshra.s32 %v814, 16
        %v1056 = vcvt.s32.f32 %v1054
        %v1057 = vcvt.s32.f32 %v1055
        %1058 = vmin.xlane.f32.xlu0 %v1057
        %v1059 = vpop.xlane.xlu0 %1058
        %vm1060 = vcmp.eq.f32.partialorder %v1057, %v1059
        %v1061 = vsel %vm1060, %v1056, inf
        %1062 = vmin.xlane.f32.xlu0 %v1061
        %v1063 = vpop.xlane.xlu0 %1062
        %v1064 = vcvt.f32.s32 %v1063
        %v1065 = vcvt.f32.s32 %v1059
        %v1066 = vshll.u32 %v1065, 16
        %v1067 = vadd.s32 %v1066, %v1064
        %v1068 = vand.u32 %v815, 65535
        %v1069 = vshra.s32 %v815, 16
        %v1070 = vcvt.s32.f32 %v1068
        %v1071 = vcvt.s32.f32 %v1069
        %1072 = vmin.xlane.f32.xlu0 %v1071
        %v1073 = vpop.xlane.xlu0 %1072
        %vm1074 = vcmp.eq.f32.partialorder %v1071, %v1073
        %v1075 = vsel %vm1074, %v1070, inf
        %1076 = vmin.xlane.f32.xlu0 %v1075
        %v1077 = vpop.xlane.xlu0 %1076
        %v1078 = vcvt.f32.s32 %v1077
        %v1079 = vcvt.f32.s32 %v1073
        %v1080 = vshll.u32 %v1079, 16
        %v1081 = vadd.s32 %v1080, %v1078
        %v1082 = vand.u32 %v816, 65535
        %v1083 = vshra.s32 %v816, 16
        %v1084 = vcvt.s32.f32 %v1082
        %v1085 = vcvt.s32.f32 %v1083
        %1086 = vmin.xlane.f32.xlu0 %v1085
        %v1087 = vpop.xlane.xlu0 %1086
        %vm1088 = vcmp.eq.f32.partialorder %v1085, %v1087
        %v1089 = vsel %vm1088, %v1084, inf
        %1090 = vmin.xlane.f32.xlu0 %v1089
        %v1091 = vpop.xlane.xlu0 %1090
        %v1092 = vcvt.f32.s32 %v1091
        %v1093 = vcvt.f32.s32 %v1087
        %v1094 = vshll.u32 %v1093, 16
        %v1095 = vadd.s32 %v1094, %v1092
        %v1096 = vand.u32 %v817, 65535
        %v1097 = vshra.s32 %v817, 16
        %v1098 = vcvt.s32.f32 %v1096
        %v1099 = vcvt.s32.f32 %v1097
        %1100 = vmin.xlane.f32.xlu0 %v1099
        %v1101 = vpop.xlane.xlu0 %1100
        %vm1102 = vcmp.eq.f32.partialorder %v1099, %v1101
        %v1103 = vsel %vm1102, %v1098, inf
        %1104 = vmin.xlane.f32.xlu0 %v1103
        %v1105 = vpop.xlane.xlu0 %1104
        %v1106 = vcvt.f32.s32 %v1105
        %v1107 = vcvt.f32.s32 %v1101
        %v1108 = vshll.u32 %v1107, 16
        %v1109 = vadd.s32 %v1108, %v1106
        %v1110 = vand.u32 %v818, 65535
        %v1111 = vshra.s32 %v818, 16
        %v1112 = vcvt.s32.f32 %v1110
        %v1113 = vcvt.s32.f32 %v1111
        %1114 = vmin.xlane.f32.xlu0 %v1113
        %v1115 = vpop.xlane.xlu0 %1114
        %vm1116 = vcmp.eq.f32.partialorder %v1113, %v1115
        %v1117 = vsel %vm1116, %v1112, inf
        %1118 = vmin.xlane.f32.xlu0 %v1117
        %v1119 = vpop.xlane.xlu0 %1118
        %v1120 = vcvt.f32.s32 %v1119
        %v1121 = vcvt.f32.s32 %v1115
        %v1122 = vshll.u32 %v1121, 16
        %v1123 = vadd.s32 %v1122, %v1120
        %v1124 = vand.u32 %v819, 65535
        %v1125 = vshra.s32 %v819, 16
        %v1126 = vcvt.s32.f32 %v1124
        %v1127 = vcvt.s32.f32 %v1125
        %1128 = vmin.xlane.f32.xlu0 %v1127
        %v1129 = vpop.xlane.xlu0 %1128
        %vm1130 = vcmp.eq.f32.partialorder %v1127, %v1129
        %v1131 = vsel %vm1130, %v1126, inf
        %1132 = vmin.xlane.f32.xlu0 %v1131
        %v1133 = vpop.xlane.xlu0 %1132
        %v1134 = vcvt.f32.s32 %v1133
        %v1135 = vcvt.f32.s32 %v1129
        %v1136 = vshll.u32 %v1135, 16
        %v1137 = vadd.s32 %v1136, %v1134
        %v1138 = vand.u32 %v820, 65535
        %v1139 = vshra.s32 %v820, 16
        %v1140 = vcvt.s32.f32 %v1138
        %v1141 = vcvt.s32.f32 %v1139
        %1142 = vmin.xlane.f32.xlu0 %v1141
        %v1143 = vpop.xlane.xlu0 %1142
        %vm1144 = vcmp.eq.f32.partialorder %v1141, %v1143
        %v1145 = vsel %vm1144, %v1140, inf
        %1146 = vmin.xlane.f32.xlu0 %v1145
        %v1147 = vpop.xlane.xlu0 %1146
        %v1148 = vcvt.f32.s32 %v1147
        %v1149 = vcvt.f32.s32 %v1143
        %v1150 = vshll.u32 %v1149, 16
        %v1151 = vadd.s32 %v1150, %v1148
        %v1152 = vand.u32 %v821, 65535
        %v1153 = vshra.s32 %v821, 16
        %v1154 = vcvt.s32.f32 %v1152
        %v1155 = vcvt.s32.f32 %v1153
        %1156 = vmin.xlane.f32.xlu0 %v1155
        %v1157 = vpop.xlane.xlu0 %1156
        %vm1158 = vcmp.eq.f32.partialorder %v1155, %v1157
        %v1159 = vsel %vm1158, %v1154, inf
        %1160 = vmin.xlane.f32.xlu0 %v1159
        %v1161 = vpop.xlane.xlu0 %1160
        %v1162 = vcvt.f32.s32 %v1161
        %v1163 = vcvt.f32.s32 %v1157
        %v1164 = vshll.u32 %v1163, 16
        %v1165 = vadd.s32 %v1164, %v1162
        %v1166 = vand.u32 %v822, 65535
        %v1167 = vshra.s32 %v822, 16
        %v1168 = vcvt.s32.f32 %v1166
        %v1169 = vcvt.s32.f32 %v1167
        %1170 = vmin.xlane.f32.xlu0 %v1169
        %v1171 = vpop.xlane.xlu0 %1170
        %vm1172 = vcmp.eq.f32.partialorder %v1169, %v1171
        %v1173 = vsel %vm1172, %v1168, inf
        %1174 = vmin.xlane.f32.xlu0 %v1173
        %v1175 = vpop.xlane.xlu0 %1174
        %v1176 = vcvt.f32.s32 %v1175
        %v1177 = vcvt.f32.s32 %v1171
        %v1178 = vshll.u32 %v1177, 16
        %v1179 = vadd.s32 %v1178, %v1176
        %v1180 = vand.u32 %v823, 65535
        %v1181 = vshra.s32 %v823, 16
        %v1182 = vcvt.s32.f32 %v1180
        %v1183 = vcvt.s32.f32 %v1181
        %1184 = vmin.xlane.f32.xlu0 %v1183
        %v1185 = vpop.xlane.xlu0 %1184
        %vm1186 = vcmp.eq.f32.partialorder %v1183, %v1185
        %v1187 = vsel %vm1186, %v1182, inf
        %1188 = vmin.xlane.f32.xlu0 %v1187
        %v1189 = vpop.xlane.xlu0 %1188
        %v1190 = vcvt.f32.s32 %v1189
        %v1191 = vcvt.f32.s32 %v1185
        %v1192 = vshll.u32 %v1191, 16
        %v1193 = vadd.s32 %v1192, %v1190
        %v1194 = vand.u32 %v824, 65535
        %v1195 = vshra.s32 %v824, 16
        %v1196 = vcvt.s32.f32 %v1194
        %v1197 = vcvt.s32.f32 %v1195
        %1198 = vmin.xlane.f32.xlu0 %v1197
        %v1199 = vpop.xlane.xlu0 %1198
        %vm1200 = vcmp.eq.f32.partialorder %v1197, %v1199
        %v1201 = vsel %vm1200, %v1196, inf
        %1202 = vmin.xlane.f32.xlu0 %v1201
        %v1203 = vpop.xlane.xlu0 %1202
        %v1204 = vcvt.f32.s32 %v1203
        %v1205 = vcvt.f32.s32 %v1199
        %v1206 = vshll.u32 %v1205, 16
        %v1207 = vadd.s32 %v1206, %v1204
        %v1208 = vand.u32 %v825, 65535
        %v1209 = vshra.s32 %v825, 16
        %v1210 = vcvt.s32.f32 %v1208
        %v1211 = vcvt.s32.f32 %v1209
        %1212 = vmin.xlane.f32.xlu0 %v1211
        %v1213 = vpop.xlane.xlu0 %1212
        %vm1214 = vcmp.eq.f32.partialorder %v1211, %v1213
        %v1215 = vsel %vm1214, %v1210, inf
        %1216 = vmin.xlane.f32.xlu0 %v1215
        %v1217 = vpop.xlane.xlu0 %1216
        %v1218 = vcvt.f32.s32 %v1217
        %v1219 = vcvt.f32.s32 %v1213
        %v1220 = vshll.u32 %v1219, 16
        %v1221 = vadd.s32 %v1220, %v1218
        %v1222 = vand.u32 %v826, 65535
        %v1223 = vshra.s32 %v826, 16
        %v1224 = vcvt.s32.f32 %v1222
        %v1225 = vcvt.s32.f32 %v1223
        %1226 = vmin.xlane.f32.xlu0 %v1225
        %v1227 = vpop.xlane.xlu0 %1226
        %vm1228 = vcmp.eq.f32.partialorder %v1225, %v1227
        %v1229 = vsel %vm1228, %v1224, inf
        %1230 = vmin.xlane.f32.xlu0 %v1229
        %v1231 = vpop.xlane.xlu0 %1230
        %v1232 = vcvt.f32.s32 %v1231
        %v1233 = vcvt.f32.s32 %v1227
        %v1234 = vshll.u32 %v1233, 16
        %v1235 = vadd.s32 %v1234, %v1232
        %v1236 = vand.u32 %v827, 65535
        %v1237 = vshra.s32 %v827, 16
        %v1238 = vcvt.s32.f32 %v1236
        %v1239 = vcvt.s32.f32 %v1237
        %1240 = vmin.xlane.f32.xlu0 %v1239
        %v1241 = vpop.xlane.xlu0 %1240
        %vm1242 = vcmp.eq.f32.partialorder %v1239, %v1241
        %v1243 = vsel %vm1242, %v1238, inf
        %1244 = vmin.xlane.f32.xlu0 %v1243
        %v1245 = vpop.xlane.xlu0 %1244
        %v1246 = vcvt.f32.s32 %v1245
        %v1247 = vcvt.f32.s32 %v1241
        %v1248 = vshll.u32 %v1247, 16
        %v1249 = vadd.s32 %v1248, %v1246
        %v1250 = vand.u32 %v828, 65535
        %v1251 = vshra.s32 %v828, 16
        %v1252 = vcvt.s32.f32 %v1250
        %v1253 = vcvt.s32.f32 %v1251
        %1254 = vmin.xlane.f32.xlu0 %v1253
        %v1255 = vpop.xlane.xlu0 %1254
        %vm1256 = vcmp.eq.f32.partialorder %v1253, %v1255
        %v1257 = vsel %vm1256, %v1252, inf
        %1258 = vmin.xlane.f32.xlu0 %v1257
        %v1259 = vpop.xlane.xlu0 %1258
        %v1260 = vcvt.f32.s32 %v1259
        %v1261 = vcvt.f32.s32 %v1255
        %v1262 = vshll.u32 %v1261, 16
        %v1263 = vadd.s32 %v1262, %v1260
        %v1264 = vand.u32 %v829, 65535
        %v1265 = vshra.s32 %v829, 16
        %v1266 = vcvt.s32.f32 %v1264
        %v1267 = vcvt.s32.f32 %v1265
        %1268 = vmin.xlane.f32.xlu0 %v1267
        %v1269 = vpop.xlane.xlu0 %1268
        %vm1270 = vcmp.eq.f32.partialorder %v1267, %v1269
        %v1271 = vsel %vm1270, %v1266, inf
        %1272 = vmin.xlane.f32.xlu0 %v1271
        %v1273 = vpop.xlane.xlu0 %1272
        %v1274 = vcvt.f32.s32 %v1273
        %v1275 = vcvt.f32.s32 %v1269
        %v1276 = vshll.u32 %v1275, 16
        %v1277 = vadd.s32 %v1276, %v1274
        %vm1278 = vcmp.eq.s32.totalorder %v765, %v843
        %vm1279 = vcmp.eq.s32.totalorder %v765, %v857
        %vm1280 = vcmp.eq.s32.totalorder %v765, %v871
        %vm1281 = vcmp.eq.s32.totalorder %v765, %v885
        %vm1282 = vcmp.eq.s32.totalorder %v765, %v899
        %vm1283 = vcmp.eq.s32.totalorder %v765, %v913
        %vm1284 = vcmp.eq.s32.totalorder %v765, %v927
        %vm1285 = vcmp.eq.s32.totalorder %v765, %v941
        %vm1286 = vcmp.eq.s32.totalorder %v765, %v955
        %vm1287 = vcmp.eq.s32.totalorder %v765, %v969
        %vm1288 = vcmp.eq.s32.totalorder %v765, %v983
        %vm1289 = vcmp.eq.s32.totalorder %v765, %v997
        %vm1290 = vcmp.eq.s32.totalorder %v765, %v1011
        %vm1291 = vcmp.eq.s32.totalorder %v765, %v1025
        %vm1292 = vcmp.eq.s32.totalorder %v765, %v1039
        %vm1293 = vcmp.eq.s32.totalorder %v765, %v1053
        %vm1294 = vcmp.eq.s32.totalorder %v765, %v1067
        %vm1295 = vcmp.eq.s32.totalorder %v765, %v1081
        %vm1296 = vcmp.eq.s32.totalorder %v765, %v1095
        %vm1297 = vcmp.eq.s32.totalorder %v765, %v1109
        %vm1298 = vcmp.eq.s32.totalorder %v765, %v1123
        %vm1299 = vcmp.eq.s32.totalorder %v765, %v1137
        %vm1300 = vcmp.eq.s32.totalorder %v765, %v1151
        %vm1301 = vcmp.eq.s32.totalorder %v765, %v1165
        %vm1302 = vcmp.eq.s32.totalorder %v765, %v1179
        %vm1303 = vcmp.eq.s32.totalorder %v765, %v1193
        %vm1304 = vcmp.eq.s32.totalorder %v765, %v1207
        %vm1305 = vcmp.eq.s32.totalorder %v765, %v1221
        %vm1306 = vcmp.eq.s32.totalorder %v765, %v1235
        %vm1307 = vcmp.eq.s32.totalorder %v765, %v1249
        %vm1308 = vcmp.eq.s32.totalorder %v765, %v1263
        %vm1309 = vcmp.eq.s32.totalorder %v765, %v1277
        %v1310 = vsel %vm1278, 1, 0
        %v1311 = vsel %vm1279, 1, 0
        %v1312 = vsel %vm1280, 1, 0
        %v1313 = vsel %vm1281, 1, 0
        %v1314 = vsel %vm1282, 1, 0
        %v1315 = vsel %vm1283, 1, 0
        %v1316 = vsel %vm1284, 1, 0
        %v1317 = vsel %vm1285, 1, 0
        %v1318 = vsel %vm1286, 1, 0
        %v1319 = vsel %vm1287, 1, 0
        %v1320 = vsel %vm1288, 1, 0
        %v1321 = vsel %vm1289, 1, 0
        %v1322 = vsel %vm1290, 1, 0
        %v1323 = vsel %vm1291, 1, 0
        %v1324 = vsel %vm1292, 1, 0
        %v1325 = vsel %vm1293, 1, 0
        %v1326 = vsel %vm1294, 1, 0
        %v1327 = vsel %vm1295, 1, 0
        %v1328 = vsel %vm1296, 1, 0
        %v1329 = vsel %vm1297, 1, 0
        %v1330 = vsel %vm1298, 1, 0
        %v1331 = vsel %vm1299, 1, 0
        %v1332 = vsel %vm1300, 1, 0
        %v1333 = vsel %vm1301, 1, 0
        %v1334 = vsel %vm1302, 1, 0
        %v1335 = vsel %vm1303, 1, 0
        %v1336 = vsel %vm1304, 1, 0
        %v1337 = vsel %vm1305, 1, 0
        %v1338 = vsel %vm1306, 1, 0
        %v1339 = vsel %vm1307, 1, 0
        %v1340 = vsel %vm1308, 1, 0
        %v1341 = vsel %vm1309, 1, 0
        %v1342 = vcvt.s32.f32 %v1310
        %v1343 = vcvt.s32.f32 %v1311
        %v1344 = vcvt.s32.f32 %v1312
        %v1345 = vcvt.s32.f32 %v1313
        %v1346 = vcvt.s32.f32 %v1314
        %v1347 = vcvt.s32.f32 %v1315
        %v1348 = vcvt.s32.f32 %v1316
        %v1349 = vcvt.s32.f32 %v1317
        %v1350 = vcvt.s32.f32 %v1318
        %v1351 = vcvt.s32.f32 %v1319
        %v1352 = vcvt.s32.f32 %v1320
        %v1353 = vcvt.s32.f32 %v1321
        %v1354 = vcvt.s32.f32 %v1322
        %v1355 = vcvt.s32.f32 %v1323
        %v1356 = vcvt.s32.f32 %v1324
        %v1357 = vcvt.s32.f32 %v1325
        %v1358 = vcvt.s32.f32 %v1326
        %v1359 = vcvt.s32.f32 %v1327
        %v1360 = vcvt.s32.f32 %v1328
        %v1361 = vcvt.s32.f32 %v1329
        %v1362 = vcvt.s32.f32 %v1330
        %v1363 = vcvt.s32.f32 %v1331
        %v1364 = vcvt.s32.f32 %v1332
        %v1365 = vcvt.s32.f32 %v1333
        %v1366 = vcvt.s32.f32 %v1334
        %v1367 = vcvt.s32.f32 %v1335
        %v1368 = vcvt.s32.f32 %v1336
        %v1369 = vcvt.s32.f32 %v1337
        %v1370 = vcvt.s32.f32 %v1338
        %v1371 = vcvt.s32.f32 %v1339
        %v1372 = vcvt.s32.f32 %v1340
        %v1373 = vcvt.s32.f32 %v1341
        %1374 = vmatprep.subr.mxu0 0.0
        %1375 = vmatpush1.msra.mxu0 %v243
        %1376 = vmatprep.subr.mxu0 0.0
        %1377 = vmatpush1.msra.mxu0 %v244
        %1378 = vmatprep.subr.mxu0 0.0
        %1379 = vmatpush1.msra.mxu0 %v245
        %1380 = vmatprep.subr.mxu0 0.0
        %1381 = vmatpush1.msra.mxu0 %v246
        %1382 = vmatprep.subr.mxu0 0.0
        %1383 = vmatpush1.msra.mxu0 %v247
        %1384 = vmatprep.subr.mxu0 0.0
        %1385 = vmatpush1.msra.mxu0 %v248
        %1386 = vmatprep.subr.mxu0 0.0
        %1387 = vmatpush1.msra.mxu0 %v249
        %1388 = vmatprep.subr.mxu0 0.0
        %1389 = vmatpush1.msra.mxu0 %v250
        %1390 = vmatprep.subr.mxu0 0.0
        %1391 = vmatpush1.msra.mxu0 %v251
        %1392 = vmatprep.subr.mxu0 0.0
        %1393 = vmatpush1.msra.mxu0 %v252
        %1394 = vmatprep.subr.mxu0 0.0
        %1395 = vmatpush1.msra.mxu0 %v253
        %1396 = vmatprep.subr.mxu0 0.0
        %1397 = vmatpush1.msra.mxu0 %v254
        %1398 = vmatprep.subr.mxu0 0.0
        %1399 = vmatpush1.msra.mxu0 %v255
        %1400 = vmatprep.subr.mxu0 0.0
        %1401 = vmatpush1.msra.mxu0 %v256
        %1402 = vmatprep.subr.mxu0 0.0
        %1403 = vmatpush1.msra.mxu0 %v257
        %1404 = vmatprep.subr.mxu0 0.0
        %1405 = vmatpush1.msra.mxu0 %v258
        %1406 = vmatprep.subr.mxu0 0.0
        %1407 = vmatpush1.msra.mxu0 0.0
        %1408 = vmatprep.subr.mxu0 0.0
        %1409 = vmatpush1.msra.mxu0 0.0
        %1410 = vmatprep.subr.mxu0 0.0
        %1411 = vmatpush1.msra.mxu0 0.0
        %1412 = vmatprep.subr.mxu0 0.0
        %1413 = vmatpush1.msra.mxu0 0.0
        %1414 = vmatprep.subr.mxu0 0.0
        %1415 = vmatpush1.msra.mxu0 0.0
        %1416 = vmatprep.subr.mxu0 0.0
        %1417 = vmatpush1.msra.mxu0 0.0
        %1418 = vmatprep.subr.mxu0 0.0
        %1419 = vmatpush1.msra.mxu0 0.0
        %1420 = vmatprep.subr.mxu0 0.0
        %1421 = vmatpush1.msra.mxu0 0.0
        %1422 = vmatprep.subr.mxu0 0.0
        %1423 = vmatpush1.msra.mxu0 0.0
        %1424 = vmatprep.subr.mxu0 0.0
        %1425 = vmatpush1.msra.mxu0 0.0
        %1426 = vmatprep.subr.mxu0 0.0
        %1427 = vmatpush1.msra.mxu0 0.0
        %1428 = vmatprep.subr.mxu0 0.0
        %1429 = vmatpush1.msra.mxu0 0.0
        %1430 = vmatprep.subr.mxu0 0.0
        %1431 = vmatpush1.msra.mxu0 0.0
        %1432 = vmatprep.subr.mxu0 0.0
        %1433 = vmatpush1.msra.mxu0 0.0
        %1434 = vmatprep.subr.mxu0 0.0
        %1435 = vmatpush1.msra.mxu0 0.0
        %1436 = vmatprep.subr.mxu0 0.0
        %1437 = vmatpush1.msra.mxu0 0.0
        %1438 = vmatprep.mubr.f32.mxu0 0.0
        %1439 = vmatmul.mubr.f32.gmra.mrb[0].mxu0 %v1342
        %v1440 = vpop.f32.mrb[0].mxu0
        %v1441 = vadd.f32 0.0, %v1440
        %v1442 = vpop.f32.mrb[0].mxu0
        %1443 = vmatprep.mubr.f32.mxu0 0.0
        %1444 = vmatmul.mubr.f32.gmra.mrb[0].mxu0 %v1343
        %v1445 = vpop.f32.mrb[0].mxu0
        %v1446 = vadd.f32 0.0, %v1445
        %v1447 = vpop.f32.mrb[0].mxu0
        %1448 = vmatprep.mubr.f32.mxu0 0.0
        %1449 = vmatmul.mubr.f32.gmra.mrb[0].mxu0 %v1344
        %v1450 = vpop.f32.mrb[0].mxu0
        %v1451 = vadd.f32 0.0, %v1450
        %v1452 = vpop.f32.mrb[0].mxu0
        %1453 = vmatprep.mubr.f32.mxu0 0.0
        %1454 = vmatmul.mubr.f32.gmra.mrb[0].mxu0 %v1345
        %v1455 = vpop.f32.mrb[0].mxu0
        %v1456 = vadd.f32 0.0, %v1455
        %v1457 = vpop.f32.mrb[0].mxu0
        %1458 = vmatprep.mubr.f32.mxu0 0.0
        %1459 = vmatmul.mubr.f32.gmra.mrb[0].mxu0 %v1346
        %v1460 = vpop.f32.mrb[0].mxu0
        %v1461 = vadd.f32 0.0, %v1460
        %v1462 = vpop.f32.mrb[0].mxu0
        %1463 = vmatprep.mubr.f32.mxu0 0.0
        %1464 = vmatmul.mubr.f32.gmra.mrb[0].mxu0 %v1347
        %v1465 = vpop.f32.mrb[0].mxu0
        %v1466 = vadd.f32 0.0, %v1465
        %v1467 = vpop.f32.mrb[0].mxu0
        %1468 = vmatprep.mubr.f32.mxu0 0.0
        %1469 = vmatmul.mubr.f32.gmra.mrb[0].mxu0 %v1348
        %v1470 = vpop.f32.mrb[0].mxu0
        %v1471 = vadd.f32 0.0, %v1470
        %v1472 = vpop.f32.mrb[0].mxu0
        %1473 = vmatprep.mubr.f32.mxu0 0.0
        %1474 = vmatmul.mubr.f32.gmra.mrb[0].mxu0 %v1349
        %v1475 = vpop.f32.mrb[0].mxu0
        %v1476 = vadd.f32 0.0, %v1475
        %v1477 = vpop.f32.mrb[0].mxu0
        %1478 = vmatprep.mubr.f32.mxu0 0.0
        %1479 = vmatmul.mubr.f32.gmra.mrb[0].mxu0 %v1350
        %v1480 = vpop.f32.mrb[0].mxu0
        %v1481 = vadd.f32 0.0, %v1480
        %v1482 = vpop.f32.mrb[0].mxu0
        %1483 = vmatprep.mubr.f32.mxu0 0.0
        %1484 = vmatmul.mubr.f32.gmra.mrb[0].mxu0 %v1351
        %v1485 = vpop.f32.mrb[0].mxu0
        %v1486 = vadd.f32 0.0, %v1485
        %v1487 = vpop.f32.mrb[0].mxu0
        %1488 = vmatprep.mubr.f32.mxu0 0.0
        %1489 = vmatmul.mubr.f32.gmra.mrb[0].mxu0 %v1352
        %v1490 = vpop.f32.mrb[0].mxu0
        %v1491 = vadd.f32 0.0, %v1490
        %v1492 = vpop.f32.mrb[0].mxu0
        %1493 = vmatprep.mubr.f32.mxu0 0.0
        %1494 = vmatmul.mubr.f32.gmra.mrb[0].mxu0 %v1353
        %v1495 = vpop.f32.mrb[0].mxu0
        %v1496 = vadd.f32 0.0, %v1495
        %v1497 = vpop.f32.mrb[0].mxu0
        %1498 = vmatprep.mubr.f32.mxu0 0.0
        %1499 = vmatmul.mubr.f32.gmra.mrb[0].mxu0 %v1354
        %v1500 = vpop.f32.mrb[0].mxu0
        %v1501 = vadd.f32 0.0, %v1500
        %v1502 = vpop.f32.mrb[0].mxu0
        %1503 = vmatprep.mubr.f32.mxu0 0.0
        %1504 = vmatmul.mubr.f32.gmra.mrb[0].mxu0 %v1355
        %v1505 = vpop.f32.mrb[0].mxu0
        %v1506 = vadd.f32 0.0, %v1505
        %v1507 = vpop.f32.mrb[0].mxu0
        %1508 = vmatprep.mubr.f32.mxu0 0.0
        %1509 = vmatmul.mubr.f32.gmra.mrb[0].mxu0 %v1356
        %v1510 = vpop.f32.mrb[0].mxu0
        %v1511 = vadd.f32 0.0, %v1510
        %v1512 = vpop.f32.mrb[0].mxu0
        %1513 = vmatprep.mubr.f32.mxu0 0.0
        %1514 = vmatmul.mubr.f32.gmra.mrb[0].mxu0 %v1357
        %v1515 = vpop.f32.mrb[0].mxu0
        %v1516 = vadd.f32 0.0, %v1515
        %v1517 = vpop.f32.mrb[0].mxu0
        %1518 = vmatprep.mubr.f32.mxu0 0.0
        %1519 = vmatmul.mubr.f32.gmra.mrb[0].mxu0 %v1358
        %v1520 = vpop.f32.mrb[0].mxu0
        %v1521 = vadd.f32 0.0, %v1520
        %v1522 = vpop.f32.mrb[0].mxu0
        %1523 = vmatprep.mubr.f32.mxu0 0.0
        %1524 = vmatmul.mubr.f32.gmra.mrb[0].mxu0 %v1359
        %v1525 = vpop.f32.mrb[0].mxu0
        %v1526 = vadd.f32 0.0, %v1525
        %v1527 = vpop.f32.mrb[0].mxu0
        %1528 = vmatprep.mubr.f32.mxu0 0.0
        %1529 = vmatmul.mubr.f32.gmra.mrb[0].mxu0 %v1360
        %v1530 = vpop.f32.mrb[0].mxu0
        %v1531 = vadd.f32 0.0, %v1530
        %v1532 = vpop.f32.mrb[0].mxu0
        %1533 = vmatprep.mubr.f32.mxu0 0.0
        %1534 = vmatmul.mubr.f32.gmra.mrb[0].mxu0 %v1361
        %v1535 = vpop.f32.mrb[0].mxu0
        %v1536 = vadd.f32 0.0, %v1535
        %v1537 = vpop.f32.mrb[0].mxu0
        %1538 = vmatprep.mubr.f32.mxu0 0.0
        %1539 = vmatmul.mubr.f32.gmra.mrb[0].mxu0 %v1362
        %v1540 = vpop.f32.mrb[0].mxu0
        %v1541 = vadd.f32 0.0, %v1540
        %v1542 = vpop.f32.mrb[0].mxu0
        %1543 = vmatprep.mubr.f32.mxu0 0.0
        %1544 = vmatmul.mubr.f32.gmra.mrb[0].mxu0 %v1363
        %v1545 = vpop.f32.mrb[0].mxu0
        %v1546 = vadd.f32 0.0, %v1545
        %v1547 = vpop.f32.mrb[0].mxu0
        %1548 = vmatprep.mubr.f32.mxu0 0.0
        %1549 = vmatmul.mubr.f32.gmra.mrb[0].mxu0 %v1364
        %v1550 = vpop.f32.mrb[0].mxu0
        %v1551 = vadd.f32 0.0, %v1550
        %v1552 = vpop.f32.mrb[0].mxu0
        %1553 = vmatprep.mubr.f32.mxu0 0.0
        %1554 = vmatmul.mubr.f32.gmra.mrb[0].mxu0 %v1365
        %v1555 = vpop.f32.mrb[0].mxu0
        %v1556 = vadd.f32 0.0, %v1555
        %v1557 = vpop.f32.mrb[0].mxu0
        %1558 = vmatprep.mubr.f32.mxu0 0.0
        %1559 = vmatmul.mubr.f32.gmra.mrb[0].mxu0 %v1366
        %v1560 = vpop.f32.mrb[0].mxu0
        %v1561 = vadd.f32 0.0, %v1560
        %v1562 = vpop.f32.mrb[0].mxu0
        %1563 = vmatprep.mubr.f32.mxu0 0.0
        %1564 = vmatmul.mubr.f32.gmra.mrb[0].mxu0 %v1367
        %v1565 = vpop.f32.mrb[0].mxu0
        %v1566 = vadd.f32 0.0, %v1565
        %v1567 = vpop.f32.mrb[0].mxu0
        %1568 = vmatprep.mubr.f32.mxu0 0.0
        %1569 = vmatmul.mubr.f32.gmra.mrb[0].mxu0 %v1368
        %v1570 = vpop.f32.mrb[0].mxu0
        %v1571 = vadd.f32 0.0, %v1570
        %v1572 = vpop.f32.mrb[0].mxu0
        %1573 = vmatprep.mubr.f32.mxu0 0.0
        %1574 = vmatmul.mubr.f32.gmra.mrb[0].mxu0 %v1369
        %v1575 = vpop.f32.mrb[0].mxu0
        %v1576 = vadd.f32 0.0, %v1575
        %v1577 = vpop.f32.mrb[0].mxu0
        %1578 = vmatprep.mubr.f32.mxu0 0.0
        %1579 = vmatmul.mubr.f32.gmra.mrb[0].mxu0 %v1370
        %v1580 = vpop.f32.mrb[0].mxu0
        %v1581 = vadd.f32 0.0, %v1580
        %v1582 = vpop.f32.mrb[0].mxu0
        %1583 = vmatprep.mubr.f32.mxu0 0.0
        %1584 = vmatmul.mubr.f32.gmra.mrb[0].mxu0 %v1371
        %v1585 = vpop.f32.mrb[0].mxu0
        %v1586 = vadd.f32 0.0, %v1585
        %v1587 = vpop.f32.mrb[0].mxu0
        %1588 = vmatprep.mubr.f32.mxu0 0.0
        %1589 = vmatmul.mubr.f32.gmra.mrb[0].mxu0 %v1372
        %v1590 = vpop.f32.mrb[0].mxu0
        %v1591 = vadd.f32 0.0, %v1590
        %v1592 = vpop.f32.mrb[0].mxu0
        %1593 = vmatprep.mubr.f32.mxu0 0.0
        %1594 = vmatmul.mubr.f32.gmra.mrb[0].mxu0 %v1373
        %v1595 = vpop.f32.mrb[0].mxu0
        %v1596 = vadd.f32 0.0, %v1595
        %v1597 = vpop.f32.mrb[0].mxu0
        %1598 = vdwg.mxu0
        %1599 = vst.msk [vmem:[%s209] sm:$0xff] %vm259, %v1441
        %1600 = vst.msk [vmem:[%s209 + $0x8] sm:$0xff] %vm259, %v1446
        %1601 = vst.msk [vmem:[%s209 + $0x10] sm:$0xff] %vm259, %v1451
        %1602 = vst.msk [vmem:[%s209 + $0x18] sm:$0xff] %vm259, %v1456
        %1603 = vst.msk [vmem:[%s209 + $0x20] sm:$0xff] %vm259, %v1461
        %1604 = vst.msk [vmem:[%s209 + $0x28] sm:$0xff] %vm259, %v1466
        %1605 = vst.msk [vmem:[%s209 + $0x30] sm:$0xff] %vm259, %v1471
        %1606 = vst.msk [vmem:[%s209 + $0x38] sm:$0xff] %vm259, %v1476
        %1607 = vst.msk [vmem:[%s209 + $0x40] sm:$0xff] %vm259, %v1481
        %1608 = vst.msk [vmem:[%s209 + $0x48] sm:$0xff] %vm259, %v1486
        %1609 = vst.msk [vmem:[%s209 + $0x50] sm:$0xff] %vm259, %v1491
        %1610 = vst.msk [vmem:[%s209 + $0x58] sm:$0xff] %vm259, %v1496
        %1611 = vst.msk [vmem:[%s209 + $0x60] sm:$0xff] %vm259, %v1501
        %1612 = vst.msk [vmem:[%s209 + $0x68] sm:$0xff] %vm259, %v1506
        %1613 = vst.msk [vmem:[%s209 + $0x70] sm:$0xff] %vm259, %v1511
        %1614 = vst.msk [vmem:[%s209 + $0x78] sm:$0xff] %vm259, %v1516
        %1615 = vst.msk [vmem:[%s209 + $0x80] sm:$0xff] %vm259, %v1521
        %1616 = vst.msk [vmem:[%s209 + $0x88] sm:$0xff] %vm259, %v1526
        %1617 = vst.msk [vmem:[%s209 + $0x90] sm:$0xff] %vm259, %v1531
        %1618 = vst.msk [vmem:[%s209 + $0x98] sm:$0xff] %vm259, %v1536
        %1619 = vst.msk [vmem:[%s209 + $0xa0] sm:$0xff] %vm259, %v1541
        %1620 = vst.msk [vmem:[%s209 + $0xa8] sm:$0xff] %vm259, %v1546
        %1621 = vst.msk [vmem:[%s209 + $0xb0] sm:$0xff] %vm259, %v1551
        %1622 = vst.msk [vmem:[%s209 + $0xb8] sm:$0xff] %vm259, %v1556
        %1623 = vst.msk [vmem:[%s209 + $0xc0] sm:$0xff] %vm259, %v1561
        %1624 = vst.msk [vmem:[%s209 + $0xc8] sm:$0xff] %vm259, %v1566
        %1625 = vst.msk [vmem:[%s209 + $0xd0] sm:$0xff] %vm259, %v1571
        %1626 = vst.msk [vmem:[%s209 + $0xd8] sm:$0xff] %vm259, %v1576
        %1627 = vst.msk [vmem:[%s209 + $0xe0] sm:$0xff] %vm259, %v1581
        %1628 = vst.msk [vmem:[%s209 + $0xe8] sm:$0xff] %vm259, %v1586
        %1629 = vst.msk [vmem:[%s209 + $0xf0] sm:$0xff] %vm259, %v1591
        %1630 = vst.msk [vmem:[%s209 + $0xf8] sm:$0xff] %vm259, %v1596
        %v1631 = vsub.f32 %v1441, %v211
        %v1632 = vsub.f32 %v1446, %v212
        %v1633 = vsub.f32 %v1451, %v213
        %v1634 = vsub.f32 %v1456, %v214
        %v1635 = vsub.f32 %v1461, %v215
        %v1636 = vsub.f32 %v1466, %v216
        %v1637 = vsub.f32 %v1471, %v217
        %v1638 = vsub.f32 %v1476, %v218
        %v1639 = vsub.f32 %v1481, %v219
        %v1640 = vsub.f32 %v1486, %v220
        %v1641 = vsub.f32 %v1491, %v221
        %v1642 = vsub.f32 %v1496, %v222
        %v1643 = vsub.f32 %v1501, %v223
        %v1644 = vsub.f32 %v1506, %v224
        %v1645 = vsub.f32 %v1511, %v225
        %v1646 = vsub.f32 %v1516, %v226
        %v1647 = vsub.f32 %v1521, %v227
        %v1648 = vsub.f32 %v1526, %v228
        %v1649 = vsub.f32 %v1531, %v229
        %v1650 = vsub.f32 %v1536, %v230
        %v1651 = vsub.f32 %v1541, %v231
        %v1652 = vsub.f32 %v1546, %v232
        %v1653 = vsub.f32 %v1551, %v233
        %v1654 = vsub.f32 %v1556, %v234
        %v1655 = vsub.f32 %v1561, %v235
        %v1656 = vsub.f32 %v1566, %v236
        %v1657 = vsub.f32 %v1571, %v237
        %v1658 = vsub.f32 %v1576, %v238
        %v1659 = vsub.f32 %v1581, %v239
        %v1660 = vsub.f32 %v1586, %v240
        %v1661 = vsub.f32 %v1591, %v241
        %v1662 = vsub.f32 %v1596, %v242
        %v1663 = vlaneseq
        %v1664 = vshrl.u32 %v1663, 7
        %v1665 = vadd.s32 %v1664, 8
        %v1666 = vadd.s32 %v1664, 16
        %v1667 = vadd.s32 %v1664, 24
        %v1668 = vadd.s32 %v1664, 32
        %v1669 = vadd.s32 %v1664, 40
        %v1670 = vadd.s32 %v1664, 48
        %v1671 = vadd.s32 %v1664, 56
        %v1672 = vadd.s32 %v1664, 64
        %v1673 = vadd.s32 %v1664, 72
        %v1674 = vadd.s32 %v1664, 80
        %v1675 = vadd.s32 %v1664, 88
        %v1676 = vadd.s32 %v1664, 96
        %v1677 = vadd.s32 %v1664, 104
        %v1678 = vadd.s32 %v1664, 112
        %v1679 = vadd.s32 %v1664, 120
        %v1680 = vadd.s32 %v1664, 128
        %v1681 = vadd.s32 %v1664, 136
        %v1682 = vadd.s32 %v1664, 144
        %v1683 = vadd.s32 %v1664, 152
        %v1684 = vadd.s32 %v1664, 160
        %v1685 = vadd.s32 %v1664, 168
        %v1686 = vadd.s32 %v1664, 176
        %v1687 = vadd.s32 %v1664, 184
        %v1688 = vadd.s32 %v1664, 192
        %v1689 = vadd.s32 %v1664, 200
        %v1690 = vadd.s32 %v1664, 208
        %v1691 = vadd.s32 %v1664, 216
        %v1692 = vadd.s32 %v1664, 224
        %v1693 = vadd.s32 %v1664, 232
        %v1694 = vadd.s32 %v1664, 240
        %v1695 = vadd.s32 %v1664, 248
        %s1696 = smul.u32 %s19, 256
        %v1697 = vstv %s1696
        %v1698 = vadd.s32 %v1664, %v1697
        %v1699 = vadd.s32 %v1665, %v1697
        %v1700 = vadd.s32 %v1666, %v1697
        %v1701 = vadd.s32 %v1667, %v1697
        %v1702 = vadd.s32 %v1668, %v1697
        %v1703 = vadd.s32 %v1669, %v1697
        %v1704 = vadd.s32 %v1670, %v1697
        %v1705 = vadd.s32 %v1671, %v1697
        %v1706 = vadd.s32 %v1672, %v1697
        %v1707 = vadd.s32 %v1673, %v1697
        %v1708 = vadd.s32 %v1674, %v1697
        %v1709 = vadd.s32 %v1675, %v1697
        %v1710 = vadd.s32 %v1676, %v1697
        %v1711 = vadd.s32 %v1677, %v1697
        %v1712 = vadd.s32 %v1678, %v1697
        %v1713 = vadd.s32 %v1679, %v1697
        %v1714 = vadd.s32 %v1680, %v1697
        %v1715 = vadd.s32 %v1681, %v1697
        %v1716 = vadd.s32 %v1682, %v1697
        %v1717 = vadd.s32 %v1683, %v1697
        %v1718 = vadd.s32 %v1684, %v1697
        %v1719 = vadd.s32 %v1685, %v1697
        %v1720 = vadd.s32 %v1686, %v1697
        %v1721 = vadd.s32 %v1687, %v1697
        %v1722 = vadd.s32 %v1688, %v1697
        %v1723 = vadd.s32 %v1689, %v1697
        %v1724 = vadd.s32 %v1690, %v1697
        %v1725 = vadd.s32 %v1691, %v1697
        %v1726 = vadd.s32 %v1692, %v1697
        %v1727 = vadd.s32 %v1693, %v1697
        %v1728 = vadd.s32 %v1694, %v1697
        %v1729 = vadd.s32 %v1695, %v1697
        %vm1730 = vcmp.lt.s32.totalorder %v1698, 500
        %vm1731 = vcmp.lt.s32.totalorder %v1699, 500
        %vm1732 = vcmp.lt.s32.totalorder %v1700, 500
        %vm1733 = vcmp.lt.s32.totalorder %v1701, 500
        %vm1734 = vcmp.lt.s32.totalorder %v1702, 500
        %vm1735 = vcmp.lt.s32.totalorder %v1703, 500
        %vm1736 = vcmp.lt.s32.totalorder %v1704, 500
        %vm1737 = vcmp.lt.s32.totalorder %v1705, 500
        %vm1738 = vcmp.lt.s32.totalorder %v1706, 500
        %vm1739 = vcmp.lt.s32.totalorder %v1707, 500
        %vm1740 = vcmp.lt.s32.totalorder %v1708, 500
        %vm1741 = vcmp.lt.s32.totalorder %v1709, 500
        %vm1742 = vcmp.lt.s32.totalorder %v1710, 500
        %vm1743 = vcmp.lt.s32.totalorder %v1711, 500
        %vm1744 = vcmp.lt.s32.totalorder %v1712, 500
        %vm1745 = vcmp.lt.s32.totalorder %v1713, 500
        %vm1746 = vcmp.lt.s32.totalorder %v1714, 500
        %vm1747 = vcmp.lt.s32.totalorder %v1715, 500
        %vm1748 = vcmp.lt.s32.totalorder %v1716, 500
        %vm1749 = vcmp.lt.s32.totalorder %v1717, 500
        %vm1750 = vcmp.lt.s32.totalorder %v1718, 500
        %vm1751 = vcmp.lt.s32.totalorder %v1719, 500
        %vm1752 = vcmp.lt.s32.totalorder %v1720, 500
        %vm1753 = vcmp.lt.s32.totalorder %v1721, 500
        %vm1754 = vcmp.lt.s32.totalorder %v1722, 500
        %vm1755 = vcmp.lt.s32.totalorder %v1723, 500
        %vm1756 = vcmp.lt.s32.totalorder %v1724, 500
        %vm1757 = vcmp.lt.s32.totalorder %v1725, 500
        %vm1758 = vcmp.lt.s32.totalorder %v1726, 500
        %vm1759 = vcmp.lt.s32.totalorder %v1727, 500
        %vm1760 = vcmp.lt.s32.totalorder %v1728, 500
        %vm1761 = vcmp.lt.s32.totalorder %v1729, 500
        %v1762 = vsel %vm1730, 1, 0
        %v1763 = vsel %vm1731, 1, 0
        %v1764 = vsel %vm1732, 1, 0
        %v1765 = vsel %vm1733, 1, 0
        %v1766 = vsel %vm1734, 1, 0
        %v1767 = vsel %vm1735, 1, 0
        %v1768 = vsel %vm1736, 1, 0
        %v1769 = vsel %vm1737, 1, 0
        %v1770 = vsel %vm1738, 1, 0
        %v1771 = vsel %vm1739, 1, 0
        %v1772 = vsel %vm1740, 1, 0
        %v1773 = vsel %vm1741, 1, 0
        %v1774 = vsel %vm1742, 1, 0
        %v1775 = vsel %vm1743, 1, 0
        %v1776 = vsel %vm1744, 1, 0
        %v1777 = vsel %vm1745, 1, 0
        %v1778 = vsel %vm1746, 1, 0
        %v1779 = vsel %vm1747, 1, 0
        %v1780 = vsel %vm1748, 1, 0
        %v1781 = vsel %vm1749, 1, 0
        %v1782 = vsel %vm1750, 1, 0
        %v1783 = vsel %vm1751, 1, 0
        %v1784 = vsel %vm1752, 1, 0
        %v1785 = vsel %vm1753, 1, 0
        %v1786 = vsel %vm1754, 1, 0
        %v1787 = vsel %vm1755, 1, 0
        %v1788 = vsel %vm1756, 1, 0
        %v1789 = vsel %vm1757, 1, 0
        %v1790 = vsel %vm1758, 1, 0
        %v1791 = vsel %vm1759, 1, 0
        %v1792 = vsel %vm1760, 1, 0
        %v1793 = vsel %vm1761, 1, 0
        %vm1794 = vcmp.eq.s32.totalorder %v1762, 1
        %vm1795 = vcmp.eq.s32.totalorder %v1763, 1
        %vm1796 = vcmp.eq.s32.totalorder %v1764, 1
        %vm1797 = vcmp.eq.s32.totalorder %v1765, 1
        %vm1798 = vcmp.eq.s32.totalorder %v1766, 1
        %vm1799 = vcmp.eq.s32.totalorder %v1767, 1
        %vm1800 = vcmp.eq.s32.totalorder %v1768, 1
        %vm1801 = vcmp.eq.s32.totalorder %v1769, 1
        %vm1802 = vcmp.eq.s32.totalorder %v1770, 1
        %vm1803 = vcmp.eq.s32.totalorder %v1771, 1
        %vm1804 = vcmp.eq.s32.totalorder %v1772, 1
        %vm1805 = vcmp.eq.s32.totalorder %v1773, 1
        %vm1806 = vcmp.eq.s32.totalorder %v1774, 1
        %vm1807 = vcmp.eq.s32.totalorder %v1775, 1
        %vm1808 = vcmp.eq.s32.totalorder %v1776, 1
        %vm1809 = vcmp.eq.s32.totalorder %v1777, 1
        %vm1810 = vcmp.eq.s32.totalorder %v1778, 1
        %vm1811 = vcmp.eq.s32.totalorder %v1779, 1
        %vm1812 = vcmp.eq.s32.totalorder %v1780, 1
        %vm1813 = vcmp.eq.s32.totalorder %v1781, 1
        %vm1814 = vcmp.eq.s32.totalorder %v1782, 1
        %vm1815 = vcmp.eq.s32.totalorder %v1783, 1
        %vm1816 = vcmp.eq.s32.totalorder %v1784, 1
        %vm1817 = vcmp.eq.s32.totalorder %v1785, 1
        %vm1818 = vcmp.eq.s32.totalorder %v1786, 1
        %vm1819 = vcmp.eq.s32.totalorder %v1787, 1
        %vm1820 = vcmp.eq.s32.totalorder %v1788, 1
        %vm1821 = vcmp.eq.s32.totalorder %v1789, 1
        %vm1822 = vcmp.eq.s32.totalorder %v1790, 1
        %vm1823 = vcmp.eq.s32.totalorder %v1791, 1
        %vm1824 = vcmp.eq.s32.totalorder %v1792, 1
        %vm1825 = vcmp.eq.s32.totalorder %v1793, 1
        %v1826 = vsel %vm1794, %v1631, 0.0
        %v1827 = vsel %vm1795, %v1632, 0.0
        %v1828 = vsel %vm1796, %v1633, 0.0
        %v1829 = vsel %vm1797, %v1634, 0.0
        %v1830 = vsel %vm1798, %v1635, 0.0
        %v1831 = vsel %vm1799, %v1636, 0.0
        %v1832 = vsel %vm1800, %v1637, 0.0
        %v1833 = vsel %vm1801, %v1638, 0.0
        %v1834 = vsel %vm1802, %v1639, 0.0
        %v1835 = vsel %vm1803, %v1640, 0.0
        %v1836 = vsel %vm1804, %v1641, 0.0
        %v1837 = vsel %vm1805, %v1642, 0.0
        %v1838 = vsel %vm1806, %v1643, 0.0
        %v1839 = vsel %vm1807, %v1644, 0.0
        %v1840 = vsel %vm1808, %v1645, 0.0
        %v1841 = vsel %vm1809, %v1646, 0.0
        %v1842 = vsel %vm1810, %v1647, 0.0
        %v1843 = vsel %vm1811, %v1648, 0.0
        %v1844 = vsel %vm1812, %v1649, 0.0
        %v1845 = vsel %vm1813, %v1650, 0.0
        %v1846 = vsel %vm1814, %v1651, 0.0
        %v1847 = vsel %vm1815, %v1652, 0.0
        %v1848 = vsel %vm1816, %v1653, 0.0
        %v1849 = vsel %vm1817, %v1654, 0.0
        %v1850 = vsel %vm1818, %v1655, 0.0
        %v1851 = vsel %vm1819, %v1656, 0.0
        %v1852 = vsel %vm1820, %v1657, 0.0
        %v1853 = vsel %vm1821, %v1658, 0.0
        %v1854 = vsel %vm1822, %v1659, 0.0
        %v1855 = vsel %vm1823, %v1660, 0.0
        %v1856 = vsel %vm1824, %v1661, 0.0
        %v1857 = vsel %vm1825, %v1662, 0.0
        %v1858 = vmul.f32 %v1826, %v1826
        %v1859 = vmul.f32 %v1827, %v1827
        %v1860 = vmul.f32 %v1828, %v1828
        %v1861 = vmul.f32 %v1829, %v1829
        %v1862 = vmul.f32 %v1830, %v1830
        %v1863 = vmul.f32 %v1831, %v1831
        %v1864 = vmul.f32 %v1832, %v1832
        %v1865 = vmul.f32 %v1833, %v1833
        %v1866 = vmul.f32 %v1834, %v1834
        %v1867 = vmul.f32 %v1835, %v1835
        %v1868 = vmul.f32 %v1836, %v1836
        %v1869 = vmul.f32 %v1837, %v1837
        %v1870 = vmul.f32 %v1838, %v1838
        %v1871 = vmul.f32 %v1839, %v1839
        %v1872 = vmul.f32 %v1840, %v1840
        %v1873 = vmul.f32 %v1841, %v1841
        %v1874 = vmul.f32 %v1842, %v1842
        %v1875 = vmul.f32 %v1843, %v1843
        %v1876 = vmul.f32 %v1844, %v1844
        %v1877 = vmul.f32 %v1845, %v1845
        %v1878 = vmul.f32 %v1846, %v1846
        %v1879 = vmul.f32 %v1847, %v1847
        %v1880 = vmul.f32 %v1848, %v1848
        %v1881 = vmul.f32 %v1849, %v1849
        %v1882 = vmul.f32 %v1850, %v1850
        %v1883 = vmul.f32 %v1851, %v1851
        %v1884 = vmul.f32 %v1852, %v1852
        %v1885 = vmul.f32 %v1853, %v1853
        %v1886 = vmul.f32 %v1854, %v1854
        %v1887 = vmul.f32 %v1855, %v1855
        %v1888 = vmul.f32 %v1856, %v1856
        %v1889 = vmul.f32 %v1857, %v1857
        %v1890 = vsel %vm259, %v1858, 0.0
        %v1891 = vsel %vm259, %v1859, 0.0
        %v1892 = vadd.f32 %v1890, %v1891
        %v1893 = vsel %vm259, %v1860, 0.0
        %v1894 = vadd.f32 %v1892, %v1893
        %v1895 = vsel %vm259, %v1861, 0.0
        %v1896 = vadd.f32 %v1894, %v1895
        %v1897 = vsel %vm259, %v1862, 0.0
        %v1898 = vadd.f32 %v1896, %v1897
        %v1899 = vsel %vm259, %v1863, 0.0
        %v1900 = vadd.f32 %v1898, %v1899
        %v1901 = vsel %vm259, %v1864, 0.0
        %v1902 = vadd.f32 %v1900, %v1901
        %v1903 = vsel %vm259, %v1865, 0.0
        %v1904 = vadd.f32 %v1902, %v1903
        %v1905 = vsel %vm259, %v1866, 0.0
        %v1906 = vadd.f32 %v1904, %v1905
        %v1907 = vsel %vm259, %v1867, 0.0
        %v1908 = vadd.f32 %v1906, %v1907
        %v1909 = vsel %vm259, %v1868, 0.0
        %v1910 = vadd.f32 %v1908, %v1909
        %v1911 = vsel %vm259, %v1869, 0.0
        %v1912 = vadd.f32 %v1910, %v1911
        %v1913 = vsel %vm259, %v1870, 0.0
        %v1914 = vadd.f32 %v1912, %v1913
        %v1915 = vsel %vm259, %v1871, 0.0
        %v1916 = vadd.f32 %v1914, %v1915
        %v1917 = vsel %vm259, %v1872, 0.0
        %v1918 = vadd.f32 %v1916, %v1917
        %v1919 = vsel %vm259, %v1873, 0.0
        %v1920 = vadd.f32 %v1918, %v1919
        %v1921 = vsel %vm259, %v1874, 0.0
        %v1922 = vadd.f32 %v1920, %v1921
        %v1923 = vsel %vm259, %v1875, 0.0
        %v1924 = vadd.f32 %v1922, %v1923
        %v1925 = vsel %vm259, %v1876, 0.0
        %v1926 = vadd.f32 %v1924, %v1925
        %v1927 = vsel %vm259, %v1877, 0.0
        %v1928 = vadd.f32 %v1926, %v1927
        %v1929 = vsel %vm259, %v1878, 0.0
        %v1930 = vadd.f32 %v1928, %v1929
        %v1931 = vsel %vm259, %v1879, 0.0
        %v1932 = vadd.f32 %v1930, %v1931
        %v1933 = vsel %vm259, %v1880, 0.0
        %v1934 = vadd.f32 %v1932, %v1933
        %v1935 = vsel %vm259, %v1881, 0.0
        %v1936 = vadd.f32 %v1934, %v1935
        %v1937 = vsel %vm259, %v1882, 0.0
        %v1938 = vadd.f32 %v1936, %v1937
        %v1939 = vsel %vm259, %v1883, 0.0
        %v1940 = vadd.f32 %v1938, %v1939
        %v1941 = vsel %vm259, %v1884, 0.0
        %v1942 = vadd.f32 %v1940, %v1941
        %v1943 = vsel %vm259, %v1885, 0.0
        %v1944 = vadd.f32 %v1942, %v1943
        %v1945 = vsel %vm259, %v1886, 0.0
        %v1946 = vadd.f32 %v1944, %v1945
        %v1947 = vsel %vm259, %v1887, 0.0
        %v1948 = vadd.f32 %v1946, %v1947
        %v1949 = vsel %vm259, %v1888, 0.0
        %v1950 = vadd.f32 %v1948, %v1949
        %v1951 = vsel %vm259, %v1889, 0.0
        %v1952 = vadd.f32 %v1950, %v1951
        %v1953 = vrot.slane %v1952, 4
        %v1954 = vadd.f32 %v1952, %v1953
        %v1955 = vrot.slane %v1954, 2
        %v1956 = vadd.f32 %v1954, %v1955
        %v1957 = vrot.slane %v1956, 1
        %v1958 = vadd.f32 %v1956, %v1957
        %vm1959 = vcmask 122880
        %1960 = vst.msk [vmem:[%s198] sm:$0x1] %vm1959, %v1958
        %s1961 = smul.u32 32, %s19
        %p1962 = scmp.lt.s32.totalorder %s1961, 63
        %s1963 = scalar_select %p1962, %s1961, 63
        %s1964 = smul.addr %s1963, 8
        %s1965 = scalar_lea.vmem %s3, %s1964
        %s1966 = sand.u32 %s121, 1
        %s1967 = scalar_lea.sflag [#allocation3], %s1966
        %s1968 = sand.u32 %s121, 1
        %s1969 = scalar_lea.vmem [#allocation2], %s1968
        // Predicated region
        $region33: #{tpu_custom_call.1} parent=31 // pred_check
          %p1970 = pneg %p105
        $region34: #{tpu_custom_call.1} parent=31 // pred_check_branch
          %1972 = sbr.rel (%p1970) target = $region36
        $region35: #{tpu_custom_call.1} parent=31 // pred_region
          %s1973 = smul.u32 32, %s19
        $region36: #{tpu_custom_call.1} parent=31 // pred_fallthru
          _
        // Predicated region
        $region37: #{tpu_custom_call.1} parent=31 // pred_check
          %p1974 = pneg %p131
        $region38: #{tpu_custom_call.1} parent=31 // pred_check_branch
          %1976 = sbr.rel (%p1974) target = $region40
        $region39: #{tpu_custom_call.1} parent=31 // pred_region
          %s1978 = ssub.s32 16, 16
          %1979 = vsyncadd %s1967, %s1978
          %s1980 = smul.addr %s19, 16
          %s1981 = scalar_lea.hbm %s4, %s1980
          %s1983 = sshll.u32 %s1969, 4
          %s1984 = int_to_ptr.vmem [resolvable:$true] %s1983
          %1986 = dma.vmem_to_hbm [thread:$0]  %s1984, 16, %s1981, %s1967
        $region40: #{tpu_custom_call.1} parent=31 // pred_fallthru
          _
      $region32: #{tpu_custom_call.1} parent=5 // pred_fallthru
        _
      %p1987 = scmp.le.s32.totalorder 2, %s14
      // Predicated region
      $region41: #{tpu_custom_call.1} parent=5 // pred_check
        %p1988 = pneg %p1987
      $region42: #{tpu_custom_call.1} parent=5 // pred_check_branch
        %1990 = sbr.rel (%p1988) target = $region44
      $region43: #{tpu_custom_call.1} parent=5 // pred_region
        %s1991 = ssub.s32 %s14, 2
        // Predicated region
        $region45: #{tpu_custom_call.1} parent=43 // pred_check
          %p1992 = pneg %p111
        $region46: #{tpu_custom_call.1} parent=43 // pred_check_branch
          %1994 = sbr.rel (%p1992) target = $region48
        $region47: #{tpu_custom_call.1} parent=43 // pred_region
          %s1995 = smul.u32 32, %s20
          %p1996 = scmp.lt.s32.totalorder %s1995, 63
          %s1997 = scalar_select %p1996, %s1995, 63
          %s1998 = smul.addr %s1997, 8
          %s1999 = scalar_lea.vmem %s3, %s1998
        $region48: #{tpu_custom_call.1} parent=43 // pred_fallthru
          _
        // Predicated region
        $region49: #{tpu_custom_call.1} parent=43 // pred_check
          %p2000 = pneg %p137
        $region50: #{tpu_custom_call.1} parent=43 // pred_check_branch
          %2002 = sbr.rel (%p2000) target = $region52
        $region51: #{tpu_custom_call.1} parent=43 // pred_region
          %s2003 = sand.u32 %s122, 1
          %s2004 = scalar_lea.sflag [#allocation3], %s2003
          %s2005 = sand.u32 %s122, 1
          %s2006 = scalar_lea.vmem [#allocation2], %s2005
          %2007 = dma.done %s2004, 16
        $region52: #{tpu_custom_call.1} parent=43 // pred_fallthru
          _
      $region44: #{tpu_custom_call.1} parent=5 // pred_fallthru
        _
    $region6: #{tpu_custom_call.1} parent=1 // loop_footer
      %s18 = sadd.s32 1, %s14
    $region7: #{tpu_custom_call.1} parent=1 // loop_footer_branch
      %13 = sbr.rel target = $region3
    $region8: #{tpu_custom_call.1} parent=1 // loop_exit
      _
    %2008 = vsyncpa [#allocation3], 1
    %s2009 = scalar_lea.sflag [#allocation3], 1
    %2010 = vsyncpa %s2009, 1

</llo_original>
